<compile_context>
chip_gen: v6e
topology: v6e:2x2x1
jax: 0.10.0
libtpu: 0.0.40
codegen_flags: <defaults>
</compile_context>

<pallas_src>
import functools

import jax
import jax.numpy as jnp
from jax.experimental import pallas as pl
from jax.experimental.pallas import tpu as pltpu


def _attention_kernel(x_ref, wqkv_ref, wproj_ref, bproj_ref, o_ref,
                      *, num_heads, head_dim):
    # x_ref: (BB, N, C)  wqkv_ref: (C, 3C)  wproj_ref: (C, C)  bproj_ref: (1, C)
    bb, n, c = x_ref.shape
    m = bb * n
    bh = bb * num_heads

    # Flatten (BB, N, C) -> (BB*N, C): larger M for the projection matmuls
    # (contiguous reshape over the leading dims, no lane movement).
    x2d = x_ref[...].reshape(m, c)

    # Fused QKV projection (qkv_bias=False). MXU sees the input dtype,
    # accumulates in f32.
    qkv = jnp.dot(x2d, wqkv_ref[...], preferred_element_type=jnp.float32)   # (M, 3C)
    qkv = qkv.astype(x_ref.dtype)

    # Head split: (M, C) -> (BB, N, H, hd) -> (BB*H, N, hd) so every head goes
    # through a single batched contraction (no per-head loop, no concatenate).
    def to_heads(t2d):
        t = t2d.reshape(bb, n, num_heads, head_dim)
        return jnp.transpose(t, (0, 2, 1, 3)).reshape(bh, n, head_dim)

    q = to_heads(qkv[:, :c])          # Q columns of w_qkv were pre-scaled host-side.
    k = to_heads(qkv[:, c:2 * c])
    v = to_heads(qkv[:, 2 * c:])

    # Scores for every (batch, head) at once: (BB*H, N, N), f32 MXU accumulation.
    s = jnp.einsum("bqd,bkd->bqk", q, k, preferred_element_type=jnp.float32)

    # Numerically-stable softmax. The divide is deferred to the (N, hd)
    # attention output (N*hd multiplies per head instead of an N*N divide).
    s = s - jnp.max(s, axis=-1, keepdims=True)                  # XLU row-max
    p = jnp.exp(s)                                              # EUP
    denom = jnp.sum(p, axis=-1, keepdims=True)                  # (BB*H, N, 1)

    att = jnp.einsum("bqk,bkd->bqd", p.astype(v.dtype), v,
                     preferred_element_type=jnp.float32)        # (BB*H, N, hd)

    inv = pl.reciprocal(denom, approx=True)                     # EUP slot, not VPU vdiv
    inv = inv * (2.0 - denom * inv)                             # one Newton step -> ~f32 exact
    att = att * inv                                             # deferred normalization

    # (BB*H, N, hd) -> (BB, N, H*hd): equivalent to .transpose(1, 2).reshape(B, N, C).
    att = jnp.transpose(att.reshape(bb, num_heads, n, head_dim), (0, 2, 1, 3))
    att2d = att.reshape(m, c).astype(x_ref.dtype)

    # Output projection + bias (bias broadcast once per grid step).
    out = jnp.dot(att2d, wproj_ref[...], preferred_element_type=jnp.float32)
    out = out + bproj_ref[...].astype(jnp.float32)
    o_ref[...] = out.reshape(bb, n, c).astype(o_ref.dtype)


def _choose_batch_block(batch, seq_len, target_rows=256):
    """How many batches to fuse per grid step.

    Aim for M = bb*seq_len >= target_rows rows per projection matmul while
    keeping >= 2 grid steps when possible (v7x has 2 TensorCores and the
    pipeline needs >1 step to overlap DMA with compute).
    """
    divisors = [d for d in range(1, batch + 1) if batch % d == 0]
    candidates = [d for d in divisors if batch // d >= 2] or divisors
    for d in candidates:
        if d * seq_len >= target_rows:
            return d
    return candidates[-1]


def attention_forward(x, w_qkv, w_proj, b_proj, *, num_heads):
    """x: (B, N, C); w_qkv: (C, 3C); w_proj: (C, C); b_proj: (1, C)."""
    B, N, C = x.shape
    assert C % num_heads == 0, "dim must be divisible by num_heads"
    head_dim = C // num_heads
    scale = head_dim ** (-0.5)

    # Fold the softmax scale into the Q third of the QKV weight: zero in-kernel
    # scaling work (the reshape (3C) -> (3, H, hd) puts Q in columns [0, C)).
    w_qkv = jnp.asarray(w_qkv)
    w_qkv_scaled = w_qkv.at[:, :C].multiply(scale)

    bb = _choose_batch_block(B, N)
    grid = (B // bb,)
    m = bb * N

    # VMEM budget: double-buffered x/out blocks + (default 2x buffered) resident
    # weight tiles + f32 intermediates (qkv, q/k/v, scores, attention out).
    dsize = jnp.dtype(x.dtype).itemsize
    wsize = jnp.dtype(w_qkv.dtype).itemsize
    io_bytes = 2 * 2 * (bb * N * C) * dsize
    weight_bytes = 2 * (3 * C * C + C * C + C) * wsize
    interm_bytes = 4 * (m * 3 * C + 3 * m * C + bb * num_heads * N * N + 2 * m * C)
    need = io_bytes + weight_bytes + interm_bytes
    try:
        vmem_cap = pltpu.get_tpu_info().vmem_capacity_bytes   # 64 MiB v7x, 128 MiB v5e/v6e
    except Exception:
        vmem_cap = 64 * 1024 * 1024
    vmem_limit = int(min(max(2 * need, 32 * 1024 * 1024), int(0.75 * vmem_cap)))

    # TODO(synk): for very long sequences where the per-head (N, N) score block no
    # longer fits the VMEM budget, split attention into a flash-style kernel with
    # Q/KV tiling + online softmax; at ViT-scale N the fused single pass fits.
    kernel = functools.partial(_attention_kernel,
                               num_heads=num_heads,
                               head_dim=head_dim)

    return pl.pallas_call(
        kernel,
        out_shape=jax.ShapeDtypeStruct((B, N, C), x.dtype),
        grid_spec=pltpu.PrefetchScalarGridSpec(
            num_scalar_prefetch=0,
            grid=grid,
            in_specs=[
                pl.BlockSpec((bb, N, C), lambda i: (i, 0, 0)),   # x, bb batches per step
                pl.BlockSpec((C, 3 * C), lambda i: (0, 0)),      # qkv weight (resident)
                pl.BlockSpec((C, C), lambda i: (0, 0)),          # proj weight (resident)
                pl.BlockSpec((1, C), lambda i: (0, 0)),          # proj bias (resident)
            ],
            out_specs=pl.BlockSpec((bb, N, C), lambda i: (i, 0, 0)),  # lane-dense (full C)
        ),
        compiler_params=pltpu.CompilerParams(
            dimension_semantics=("parallel",),
            vmem_limit_bytes=vmem_limit),
    )(x, w_qkv_scaled, w_proj, b_proj)


def attention_reference(x, w_qkv, w_proj, b_proj, *, num_heads):
    B, N, C = x.shape
    hd = C // num_heads
    scale = hd ** (-0.5)
    qkv = jnp.einsum("bnc,cd->bnd", x, w_qkv)                    # (B, N, 3C)
    qkv = qkv.reshape(B, N, 3, num_heads, hd).transpose(2, 0, 3, 1, 4)
    q, k, v = qkv[0], qkv[1], qkv[2]                             # (B, H, N, hd)
    attn = jnp.einsum("bhnd,bhmd->bhnm", q, k) * scale
    attn = jax.nn.softmax(attn, axis=-1)
    out = jnp.einsum("bhnm,bhmd->bhnd", attn, v)                 # (B, H, N, hd)
    out = out.transpose(0, 2, 1, 3).reshape(B, N, C)
    return jnp.einsum("bnc,cd->bnd", out, w_proj) + b_proj[0]


if __name__ == "__main__":
    B, N, C = 2, 8, 32
    num_heads = 8

    key = jax.random.PRNGKey(0)
    kx, kq, kp, kb = jax.random.split(key, 4)

    x = jax.random.normal(kx, (B, N, C), dtype=jnp.float32)
    # nn.Linear(dim, dim*3, bias=False): weight (3C, C); stored here transposed as (C, 3C).
    w_qkv = jax.random.normal(kq, (C, 3 * C), dtype=jnp.float32) * 0.05
    # nn.Linear(dim, dim): weight (C, C) + bias (C,); stored transposed as (C, C), bias (1, C).
    w_proj = jax.random.normal(kp, (C, C), dtype=jnp.float32) * 0.05
    b_proj = jax.random.normal(kb, (1, C), dtype=jnp.float32) * 0.05

    out = attention_forward(x, w_qkv, w_proj, b_proj, num_heads=num_heads)
    out = jax.block_until_ready(out)

    ref = attention_reference(x, w_qkv, w_proj, b_proj, num_heads=num_heads)
    assert out.shape == (B, N, C)
    # 1e-3 tolerance: approx reciprocal (+1 Newton step) in the softmax denominator.
    assert jnp.allclose(out, ref, atol=1e-3, rtol=1e-3), "mismatch vs reference"

    print("KERNEL_OK")
</pallas_src>

<mosaic_0001>
module attributes {stable_mosaic.version = 11 : i64} {
  func.func @_attention_kernel(%arg0: i32, %arg1: memref<1x8x32xf32, #tpu.memory_space<vmem>>, %arg2: memref<32x96xf32, #tpu.memory_space<vmem>>, %arg3: memref<32x32xf32, #tpu.memory_space<vmem>>, %arg4: memref<1x32xf32, #tpu.memory_space<vmem>>, %arg5: memref<1x8x32xf32, #tpu.memory_space<vmem>>) attributes {dimension_semantics = [#tpu.dimension_semantics<parallel>], iteration_bounds = array<i64: 2>, scalar_prefetch = 0 : i64, scratch_operands = 0 : i64, tpu.core_type = #tpu.core_type<tc>, window_params = [{transform_indices = @transform_0, window_bounds = array<i64: 1, 8, 32>}, {pipeline_mode = #tpu.pipeline_mode<synchronous>, transform_indices = @transform_1, window_bounds = array<i64: 32, 96>}, {pipeline_mode = #tpu.pipeline_mode<synchronous>, transform_indices = @transform_2, window_bounds = array<i64: 32, 32>}, {pipeline_mode = #tpu.pipeline_mode<synchronous>, transform_indices = @transform_3, window_bounds = array<i64: 1, 32>}, {transform_indices = @transform_4, window_bounds = array<i64: 1, 8, 32>}]} {
    %c0 = arith.constant 0 : index
    %c0_0 = arith.constant 0 : index
    %c0_1 = arith.constant 0 : index
    %0 = vector.load %arg1[%c0, %c0_0, %c0_1] : memref<1x8x32xf32, #tpu.memory_space<vmem>>, vector<1x8x32xf32>
    %1 = vector.shape_cast %0 : vector<1x8x32xf32> to vector<8x32xf32>
    %c0_2 = arith.constant 0 : index
    %c0_3 = arith.constant 0 : index
    %2 = vector.load %arg2[%c0_2, %c0_3] : memref<32x96xf32, #tpu.memory_space<vmem>>, vector<32x96xf32>
    %cst = arith.constant dense<0.000000e+00> : vector<8x96xf32>
    %3 = tpu.matmul %1, %2, %cst {dimension_numbers = #tpu.dot_dimension_numbers<[1], [0], [0], [1], [0, 0, 1, 1], [], []>} : vector<8x32xf32>, vector<32x96xf32>, vector<8x96xf32> -> vector<8x96xf32>
    %4 = vector.extract_strided_slice %3 {offsets = [0, 0], sizes = [8, 32], strides = [1, 1]} : vector<8x96xf32> to vector<8x32xf32>
    %5 = vector.shape_cast %4 : vector<8x32xf32> to vector<1x8x8x4xf32>
    %6 = tpu.transpose %5, [0, 2, 1, 3] : vector<1x8x8x4xf32> -> vector<1x8x8x4xf32>
    %7 = vector.shape_cast %6 : vector<1x8x8x4xf32> to vector<8x8x4xf32>
    %8 = vector.extract_strided_slice %3 {offsets = [0, 32], sizes = [8, 32], strides = [1, 1]} : vector<8x96xf32> to vector<8x32xf32>
    %9 = vector.shape_cast %8 : vector<8x32xf32> to vector<1x8x8x4xf32>
    %10 = tpu.transpose %9, [0, 2, 1, 3] : vector<1x8x8x4xf32> -> vector<1x8x8x4xf32>
    %11 = vector.shape_cast %10 : vector<1x8x8x4xf32> to vector<8x8x4xf32>
    %12 = vector.extract_strided_slice %3 {offsets = [0, 64], sizes = [8, 32], strides = [1, 1]} : vector<8x96xf32> to vector<8x32xf32>
    %13 = vector.shape_cast %12 : vector<8x32xf32> to vector<1x8x8x4xf32>
    %14 = tpu.transpose %13, [0, 2, 1, 3] : vector<1x8x8x4xf32> -> vector<1x8x8x4xf32>
    %15 = vector.shape_cast %14 : vector<1x8x8x4xf32> to vector<8x8x4xf32>
    "tpu.trace_start"() <{level = 10 : i32, message = "bqd,bkd->bqk"}> : () -> ()
    %cst_4 = arith.constant dense<0.000000e+00> : vector<8x8x8xf32>
    %16 = tpu.matmul %7, %11, %cst_4 {dimension_numbers = #tpu.dot_dimension_numbers<[2], [2], [1], [1], [0, 0, 0, 1, 1, 1], [0], [0]>} : vector<8x8x4xf32>, vector<8x8x4xf32>, vector<8x8x8xf32> -> vector<8x8x8xf32>
    "tpu.trace_stop"() : () -> ()
    %cst_5 = arith.constant dense<0xFF800000> : vector<8x8xf32>
    %17 = vector.multi_reduction <maximumf>, %16, %cst_5 [2] : vector<8x8x8xf32> to vector<8x8xf32>
    %18 = vector.shape_cast %17 : vector<8x8xf32> to vector<8x8x1xf32>
    %19 = vector.broadcast %18 : vector<8x8x1xf32> to vector<8x8x8xf32>
    %20 = arith.subf %16, %19 : vector<8x8x8xf32>
    %21 = math.exp %20 : vector<8x8x8xf32>
    %cst_6 = arith.constant dense<0.000000e+00> : vector<8x8xf32>
    %22 = vector.multi_reduction <add>, %21, %cst_6 [2] : vector<8x8x8xf32> to vector<8x8xf32>
    %23 = vector.shape_cast %22 : vector<8x8xf32> to vector<8x8x1xf32>
    "tpu.trace_start"() <{level = 10 : i32, message = "bqk,bkd->bqd"}> : () -> ()
    %cst_7 = arith.constant dense<0.000000e+00> : vector<8x8x4xf32>
    %24 = tpu.matmul %21, %15, %cst_7 {dimension_numbers = #tpu.dot_dimension_numbers<[2], [1], [1], [2], [0, 0, 0, 1, 1, 2], [0], [0]>} : vector<8x8x8xf32>, vector<8x8x4xf32>, vector<8x8x4xf32> -> vector<8x8x4xf32>
    "tpu.trace_stop"() : () -> ()
    %25 = tpu.reciprocal %23 {approx = true} : vector<8x8x1xf32> -> vector<8x8x1xf32>
    %26 = arith.mulf %23, %25 : vector<8x8x1xf32>
    %cst_8 = arith.constant 2.000000e+00 : f32
    %27 = vector.broadcast %cst_8 : f32 to vector<8x8x1xf32>
    %28 = arith.subf %27, %26 : vector<8x8x1xf32>
    %29 = arith.mulf %25, %28 : vector<8x8x1xf32>
    %30 = vector.broadcast %29 : vector<8x8x1xf32> to vector<8x8x4xf32>
    %31 = arith.mulf %24, %30 : vector<8x8x4xf32>
    %32 = vector.shape_cast %31 : vector<8x8x4xf32> to vector<1x8x8x4xf32>
    %33 = tpu.transpose %32, [0, 2, 1, 3] : vector<1x8x8x4xf32> -> vector<1x8x8x4xf32>
    %34 = vector.shape_cast %33 : vector<1x8x8x4xf32> to vector<8x32xf32>
    %c0_9 = arith.constant 0 : index
    %c0_10 = arith.constant 0 : index
    %35 = vector.load %arg3[%c0_9, %c0_10] : memref<32x32xf32, #tpu.memory_space<vmem>>, vector<32x32xf32>
    %cst_11 = arith.constant dense<0.000000e+00> : vector<8x32xf32>
    %36 = tpu.matmul %34, %35, %cst_11 {dimension_numbers = #tpu.dot_dimension_numbers<[1], [0], [0], [1], [0, 0, 1, 1], [], []>} : vector<8x32xf32>, vector<32x32xf32>, vector<8x32xf32> -> vector<8x32xf32>
    %c0_12 = arith.constant 0 : index
    %c0_13 = arith.constant 0 : index
    %37 = vector.load %arg4[%c0_12, %c0_13] : memref<1x32xf32, #tpu.memory_space<vmem>>, vector<1x32xf32>
    %38 = vector.broadcast %37 : vector<1x32xf32> to vector<8x32xf32>
    %39 = arith.addf %36, %38 : vector<8x32xf32>
    %40 = vector.shape_cast %39 : vector<8x32xf32> to vector<1x8x32xf32>
    %c0_14 = arith.constant 0 : index
    %c0_15 = arith.constant 0 : index
    %c0_16 = arith.constant 0 : index
    %41 = vector.load %arg5[%c0_14, %c0_15, %c0_16] : memref<1x8x32xf32, #tpu.memory_space<vmem>>, vector<1x8x32xf32>
    tpu.vector_store %arg5[%c0_14, %c0_15, %c0_16], %40 {strides = array<i32>} : memref<1x8x32xf32, #tpu.memory_space<vmem>>, vector<1x8x32xf32>,
    return
  }
  func.func @transform_0(%arg0: i32) -> (i32, i32, i32) {
    %c0_i32 = arith.constant 0 : i32
    %c0_i32_0 = arith.constant 0 : i32
    %c0_i32_1 = arith.constant 0 : i32
    return %arg0, %c0_i32, %c0_i32_0 : i32, i32, i32
  }
  func.func @transform_1(%arg0: i32) -> (i32, i32) {
    %c0_i32 = arith.constant 0 : i32
    %c0_i32_0 = arith.constant 0 : i32
    %c0_i32_1 = arith.constant 0 : i32
    return %c0_i32, %c0_i32_0 : i32, i32
  }
  func.func @transform_2(%arg0: i32) -> (i32, i32) {
    %c0_i32 = arith.constant 0 : i32
    %c0_i32_0 = arith.constant 0 : i32
    %c0_i32_1 = arith.constant 0 : i32
    return %c0_i32, %c0_i32_0 : i32, i32
  }
  func.func @transform_3(%arg0: i32) -> (i32, i32) {
    %c0_i32 = arith.constant 0 : i32
    %c0_i32_0 = arith.constant 0 : i32
    %c0_i32_1 = arith.constant 0 : i32
    return %c0_i32, %c0_i32_0 : i32, i32
  }
  func.func @transform_4(%arg0: i32) -> (i32, i32, i32) {
    %c0_i32 = arith.constant 0 : i32
    %c0_i32_0 = arith.constant 0 : i32
    %c0_i32_1 = arith.constant 0 : i32
    return %arg0, %c0_i32, %c0_i32_0 : i32, i32, i32
  }
}

</mosaic_0001>

<llo_original>
// kernel: tpu_custom_call.1
$region0: #{tpu_custom_call.1}
  #allocation0 [shape = 'u32[]', space=smem, size = 0x4, offset = 0x4, fixed_abs, tag = 'smem constant byte address 0x4 - core index']
  #allocation1 [shape = 'u32[144,128]{1,0:T(1,128)}', space=vmem, size = 0x12000, scoped, tag = 'internal scratch']
  %s0 = inlined_call_operand.hbm [shape: f32[2,8,32], index: 0, kind: input, shape index: {}]
  %s1 = inlined_call_operand.hbm [shape: f32[32,96], index: 1, kind: input, shape index: {}]
  %s2 = inlined_call_operand.hbm [shape: f32[32,32], index: 2, kind: input, shape index: {}]
  %s3 = inlined_call_operand.vmem [shape: f32[1,32], index: 3, kind: input, shape index: {}]
  %s4 = inlined_call_operand.hbm [shape: f32[2,8,32], index: 4, kind: output, shape index: {}]
  %s5 = sld [smem:[#allocation0]]
  $region61: #{tpu_custom_call.1} parent=0
    _
  %s7 = ssub.s32 1, %s5
  %s8 = scalar_select 0, %s7, %s5
  $region1: #{tpu_custom_call.1} parent=0
    #allocation2 [shape = 'u8[8192]{0}', space=vmem, size = 0x2000, scoped, tag = 'input window, operand 0']
    #allocation3 [shape = 's32[2]{0}', space=sflag, size = 0x8, scoped, tag = 'scoped memory for tpu_custom_call.1']
    #allocation4 [shape = 's32[2]{0}', space=sflag, size = 0x8, scoped, tag = 'scoped memory for tpu_custom_call.1']
    #allocation5 [shape = 'u8[16384]{0}', space=vmem, size = 0x4000, scoped, tag = 'input window, operand 1, single buffered']
    #allocation6 [shape = 's32[1]{0}', space=sflag, size = 0x4, scoped, tag = 'scoped memory for tpu_custom_call.1']
    #allocation7 [shape = 'u8[16384]{0}', space=vmem, size = 0x4000, scoped, tag = 'input window, operand 2, single buffered']
    #allocation8 [shape = 'u8[8192]{0}', space=vmem, size = 0x2000, scoped, tag = 'output window, operand 0']
    %9 = vsyncpa [#allocation3], 0
    %s10 = scalar_lea.sflag [#allocation3], 1
    %11 = vsyncpa %s10, 0
    %12 = vsyncpa [#allocation6], 0
    %13 = vsyncpa [#allocation4], 0
    %s14 = scalar_lea.sflag [#allocation4], 1
    %15 = vsyncpa %s14, 0
    loop: start=0, step=1, limit=4
    $region2: #{tpu_custom_call.1} parent=1 // loop_pre_header
      _
    $region3: #{tpu_custom_call.1} parent=1 // loop_header
      %s17 = sphi 0, %s21
      %p18 = scmp.ge.s32.totalorder %s17, 4
      %s27 = sphi 0, %s29
      %s30 = sphi 0, %s27
      %s31 = sphi 0, %s30
      %s47 = sphi 0, %s31
      %s51 = sphi 0, %s51
      %s53 = sphi 0, %s51
      %s54 = sphi 0, %s53
      %s68 = sphi 0, %s54
      %s72 = sphi 0, %s72
      %s74 = sphi 0, %s72
      %s75 = sphi 0, %s74
      %s89 = sphi 0, %s75
      %s93 = sphi 0, %s93
      %s95 = sphi 0, %s93
      %s96 = sphi 0, %s95
      %s110 = sphi 0, %s96
      %s116 = sphi 0, %s118
      %s119 = sphi 0, %s116
      %s120 = sphi 0, %s119
      %s136 = sphi 0, %s120
    $region4: #{tpu_custom_call.1} parent=1 // loop_header_branch
      %20 = sbr.rel (%p18) target = $region8
    $region5: #{tpu_custom_call.1} parent=1 // loop_body
      %s22 = ssub.s32 %s17, 1
      %s23 = ssub.s32 %s17, 2
      %s24 = sadd.s32 %s17, 1
      %s25 = ssub.s32 %s17, %s24
      %p26 = scmp.eq.s32.totalorder %s25, 0
      %s28 = sadd.s32 %s27, 1
      %s29 = scalar_select %p26, %s27, %s28
      %p32 = pneg %p26
      %p33 = scmp.eq.s32.totalorder %s17, 1
      %p34 = por %p32, %p33
      %p35 = scmp.ne.s32.totalorder %s27, %s30
      %p36 = scmp.eq.s32.totalorder %s17, 0
      %p37 = por %p35, %p36
      %p38 = scmp.ne.s32.totalorder %s27, %s30
      %p39 = scmp.eq.s32.totalorder %s22, 1
      %p40 = por %p38, %p39
      %p41 = scmp.ne.s32.totalorder %s30, %s31
      %p42 = scmp.eq.s32.totalorder %s22, 0
      %p43 = por %p41, %p42
      %p44 = scmp.ne.s32.totalorder %s30, %s31
      %p45 = scmp.eq.s32.totalorder %s23, 1
      %p46 = por %p44, %p45
      %p48 = scmp.ne.s32.totalorder %s31, %s47
      %p49 = scmp.eq.s32.totalorder %s23, 0
      %p50 = por %p48, %p49
      %s52 = sadd.s32 %s51, 1
      %p55 = scmp.eq.s32.totalorder %s17, 1
      %p56 = scmp.ne.s32.totalorder %s51, %s53
      %p57 = scmp.eq.s32.totalorder %s17, 0
      %p58 = por %p56, %p57
      %p59 = scmp.ne.s32.totalorder %s51, %s53
      %p60 = scmp.eq.s32.totalorder %s22, 1
      %p61 = por %p59, %p60
      %p62 = scmp.ne.s32.totalorder %s53, %s54
      %p63 = scmp.eq.s32.totalorder %s22, 0
      %p64 = por %p62, %p63
      %p65 = scmp.ne.s32.totalorder %s53, %s54
      %p66 = scmp.eq.s32.totalorder %s23, 1
      %p67 = por %p65, %p66
      %p69 = scmp.ne.s32.totalorder %s54, %s68
      %p70 = scmp.eq.s32.totalorder %s23, 0
      %p71 = por %p69, %p70
      %s73 = sadd.s32 %s72, 1
      %p76 = scmp.eq.s32.totalorder %s17, 1
      %p77 = scmp.ne.s32.totalorder %s72, %s74
      %p78 = scmp.eq.s32.totalorder %s17, 0
      %p79 = por %p77, %p78
      %p80 = scmp.ne.s32.totalorder %s72, %s74
      %p81 = scmp.eq.s32.totalorder %s22, 1
      %p82 = por %p80, %p81
      %p83 = scmp.ne.s32.totalorder %s74, %s75
      %p84 = scmp.eq.s32.totalorder %s22, 0
      %p85 = por %p83, %p84
      %p86 = scmp.ne.s32.totalorder %s74, %s75
      %p87 = scmp.eq.s32.totalorder %s23, 1
      %p88 = por %p86, %p87
      %p90 = scmp.ne.s32.totalorder %s75, %s89
      %p91 = scmp.eq.s32.totalorder %s23, 0
      %p92 = por %p90, %p91
      %s94 = sadd.s32 %s93, 1
      %p97 = scmp.eq.s32.totalorder %s17, 1
      %p98 = scmp.ne.s32.totalorder %s93, %s95
      %p99 = scmp.eq.s32.totalorder %s17, 0
      %p100 = por %p98, %p99
      %p101 = scmp.ne.s32.totalorder %s93, %s95
      %p102 = scmp.eq.s32.totalorder %s22, 1
      %p103 = por %p101, %p102
      %p104 = scmp.ne.s32.totalorder %s95, %s96
      %p105 = scmp.eq.s32.totalorder %s22, 0
      %p106 = por %p104, %p105
      %p107 = scmp.ne.s32.totalorder %s95, %s96
      %p108 = scmp.eq.s32.totalorder %s23, 1
      %p109 = por %p107, %p108
      %p111 = scmp.ne.s32.totalorder %s96, %s110
      %p112 = scmp.eq.s32.totalorder %s23, 0
      %p113 = por %p111, %p112
      %s114 = ssub.s32 %s17, %s24
      %p115 = scmp.eq.s32.totalorder %s114, 0
      %s117 = sadd.s32 %s116, 1
      %s118 = scalar_select %p115, %s116, %s117
      %p121 = pneg %p115
      %p122 = scmp.eq.s32.totalorder %s17, 1
      %p123 = por %p121, %p122
      %p124 = scmp.ne.s32.totalorder %s116, %s119
      %p125 = scmp.eq.s32.totalorder %s17, 0
      %p126 = por %p124, %p125
      %p127 = scmp.ne.s32.totalorder %s116, %s119
      %p128 = scmp.eq.s32.totalorder %s22, 1
      %p129 = por %p127, %p128
      %p130 = scmp.ne.s32.totalorder %s119, %s120
      %p131 = scmp.eq.s32.totalorder %s22, 0
      %p132 = por %p130, %p131
      %p133 = scmp.ne.s32.totalorder %s119, %s120
      %p134 = scmp.eq.s32.totalorder %s23, 1
      %p135 = por %p133, %p134
      %p137 = scmp.ne.s32.totalorder %s120, %s136
      %p138 = scmp.eq.s32.totalorder %s23, 0
      %p139 = por %p137, %p138
      %p140 = scmp.le.s32.totalorder 1, %s17
      %p141 = scmp.lt.s32.totalorder %s17, 3
      %p142 = pnand %p140, %p141
      %p143 = pneg %p142
      // Predicated region
      $region9: #{tpu_custom_call.1} parent=5 // pred_check
        _
      $region10: #{tpu_custom_call.1} parent=5 // pred_check_branch
        %145 = sbr.rel (%p142) target = $region12
      $region11: #{tpu_custom_call.1} parent=5 // pred_region
        %s146 = ssub.s32 %s17, 1
        // Predicated region
        $region13: #{tpu_custom_call.1} parent=11 // pred_check
          %p147 = pneg %p64
        $region14: #{tpu_custom_call.1} parent=11 // pred_check_branch
          %149 = sbr.rel (%p147) target = $region16
        $region15: #{tpu_custom_call.1} parent=11 // pred_region
          %s151 = ssub.s32 512, 512
          %152 = vsyncadd [#allocation6], %s151
          %s153 = sshll.u32 [#allocation5], 4
          %s154 = int_to_ptr.vmem [resolvable:$true] %s153
          %159 = dma.hbm_to_vmem [thread:$0]  %s1, 512, %s154, [#allocation6], 128, 128, 8
        $region16: #{tpu_custom_call.1} parent=11 // pred_fallthru
          _
        // Predicated region
        $region17: #{tpu_custom_call.1} parent=11 // pred_check
          %p160 = pneg %p85
        $region18: #{tpu_custom_call.1} parent=11 // pred_check_branch
          %162 = sbr.rel (%p160) target = $region20
        $region19: #{tpu_custom_call.1} parent=11 // pred_region
          %s164 = ssub.s32 512, 512
          %165 = vsyncadd [#allocation6], %s164
          %s166 = sshll.u32 [#allocation7], 4
          %s167 = int_to_ptr.vmem [resolvable:$true] %s166
          %172 = dma.hbm_to_vmem [thread:$0]  %s2, 512, %s167, [#allocation6], 128, 128, 8
        $region20: #{tpu_custom_call.1} parent=11 // pred_fallthru
          _
        // Predicated region
        $region21: #{tpu_custom_call.1} parent=11 // pred_check
          %p173 = pneg %p106
        $region22: #{tpu_custom_call.1} parent=11 // pred_check_branch
          %175 = sbr.rel (%p173) target = $region24
        $region23: #{tpu_custom_call.1} parent=11 // pred_region
          _
        $region24: #{tpu_custom_call.1} parent=11 // pred_fallthru
          _
      $region12: #{tpu_custom_call.1} parent=5 // pred_fallthru
        _
      %p176 = scmp.lt.s32.totalorder %s17, 2
      // Predicated region
      $region25: #{tpu_custom_call.1} parent=5 // pred_check
        %p177 = pneg %p176
      $region26: #{tpu_custom_call.1} parent=5 // pred_check_branch
        %179 = sbr.rel (%p177) target = $region28
      $region27: #{tpu_custom_call.1} parent=5 // pred_region
        // Predicated region
        $region29: #{tpu_custom_call.1} parent=27 // pred_check
          %p180 = pneg %p37
        $region30: #{tpu_custom_call.1} parent=27 // pred_check_branch
          %182 = sbr.rel (%p180) target = $region32
        $region31: #{tpu_custom_call.1} parent=27 // pred_region
          %s183 = sand.u32 %s27, 1
          %s184 = scalar_lea.sflag [#allocation3], %s183
          %s185 = sand.u32 %s27, 1
          %s186 = smul.addr %s185, 8
          %s187 = scalar_lea.vmem [#allocation2], %s186
          %s189 = ssub.s32 128, 128
          %190 = vsyncadd %s184, %s189
          %s191 = smul.addr %s17, 128
          %s192 = scalar_lea.hbm %s0, %s191
          %s194 = sshll.u32 %s187, 4
          %s195 = int_to_ptr.vmem [resolvable:$true] %s194
          %197 = dma.hbm_to_vmem [thread:$0]  %s192, 128, %s195, %s184
        $region32: #{tpu_custom_call.1} parent=27 // pred_fallthru
          _
      $region28: #{tpu_custom_call.1} parent=5 // pred_fallthru
        _
      %p198 = scmp.le.s32.totalorder 1, %s17
      %p199 = scmp.lt.s32.totalorder %s17, 3
      %p200 = pnand %p198, %p199
      %p201 = pneg %p200
      // Predicated region
      $region33: #{tpu_custom_call.1} parent=5 // pred_check
        _
      $region34: #{tpu_custom_call.1} parent=5 // pred_check_branch
        %203 = sbr.rel (%p200) target = $region36
      $region35: #{tpu_custom_call.1} parent=5 // pred_region
        %s204 = ssub.s32 %s17, 1
        %s205 = sand.u32 %s30, 1
        %s206 = scalar_lea.sflag [#allocation3], %s205
        %s207 = sand.u32 %s30, 1
        %s208 = smul.addr %s207, 8
        %s209 = scalar_lea.vmem [#allocation2], %s208
        // Predicated region
        $region37: #{tpu_custom_call.1} parent=35 // pred_check
          %p210 = pneg %p43
        $region38: #{tpu_custom_call.1} parent=35 // pred_check_branch
          %212 = sbr.rel (%p210) target = $region40
        $region39: #{tpu_custom_call.1} parent=35 // pred_region
          %213 = dma.done %s206, 128
        $region40: #{tpu_custom_call.1} parent=35 // pred_fallthru
          _
        // Predicated region
        $region41: #{tpu_custom_call.1} parent=35 // pred_check
          %p214 = pneg %p64
        $region42: #{tpu_custom_call.1} parent=35 // pred_check_branch
          %216 = sbr.rel (%p214) target = $region44
        $region43: #{tpu_custom_call.1} parent=35 // pred_region
          %217 = dma.done [#allocation6], 512
        $region44: #{tpu_custom_call.1} parent=35 // pred_fallthru
          _
        // Predicated region
        $region45: #{tpu_custom_call.1} parent=35 // pred_check
          %p218 = pneg %p85
        $region46: #{tpu_custom_call.1} parent=35 // pred_check_branch
          %220 = sbr.rel (%p218) target = $region48
        $region47: #{tpu_custom_call.1} parent=35 // pred_region
          %221 = dma.done [#allocation6], 512
        $region48: #{tpu_custom_call.1} parent=35 // pred_fallthru
          _
        %s222 = sand.u32 %s30, 1
        %s223 = scalar_lea.sflag [#allocation3], %s222
        %s224 = sand.u32 %s30, 1
        %s225 = smul.addr %s224, 8
        %s226 = scalar_lea.vmem [#allocation2], %s225
        %p227 = pneg %p43
        %p228 = pneg %p40
        %p229 = pneg %p64
        %p230 = pneg %p61
        %p231 = pneg %p85
        %p232 = pneg %p82
        %p233 = pneg %p106
        %p234 = pneg %p103
        %p235 = pneg %p132
        %p236 = pneg %p129
        %s237 = sand.u32 %s119, 1
        %s238 = scalar_lea.sflag [#allocation4], %s237
        %s239 = sand.u32 %s119, 1
        %s240 = smul.addr %s239, 8
        %s241 = scalar_lea.vmem [#allocation8], %s240
        %v242 = vld [vmem:[%s209] sm:$0xff]
        %v243 = vld [vmem:[#allocation5] sm:$0xff]
        %v244 = vld [vmem:[#allocation5 + $0x8] sm:$0xff]
        %v245 = vld [vmem:[#allocation5 + $0x10] sm:$0xff]
        %v246 = vld [vmem:[#allocation5 + $0x18] sm:$0xff]
        %vm247 = vcmask 261120
        %v249 = vsel %vm247, %v242, 0
        %251 = vmatprep.subr.mxu0 0.0
        %252 = vmatpush1.msra.mxu0 0.0
        %253 = vmatprep.subr.mxu0 0.0
        %254 = vmatpush1.msra.mxu0 0.0
        %255 = vmatprep.subr.mxu0 0.0
        %256 = vmatpush1.msra.mxu0 0.0
        %257 = vmatprep.subr.mxu0 0.0
        %258 = vmatpush1.msra.mxu0 0.0
        %259 = vmatprep.subr.mxu0 0.0
        %260 = vmatpush1.msra.mxu0 0.0
        %261 = vmatprep.subr.mxu0 0.0
        %262 = vmatpush1.msra.mxu0 0.0
        %263 = vmatprep.subr.mxu0 0.0
        %264 = vmatpush1.msra.mxu0 0.0
        %265 = vmatprep.subr.mxu0 0.0
        %266 = vmatpush1.msra.mxu0 0.0
        %267 = vmatprep.subr.mxu0 0.0
        %268 = vmatpush1.msra.mxu0 0.0
        %269 = vmatprep.subr.mxu0 0.0
        %270 = vmatpush1.msra.mxu0 0.0
        %271 = vmatprep.subr.mxu0 0.0
        %272 = vmatpush1.msra.mxu0 0.0
        %273 = vmatprep.subr.mxu0 0.0
        %274 = vmatpush1.msra.mxu0 0.0
        %275 = vmatprep.subr.mxu0 0.0
        %276 = vmatpush1.msra.mxu0 %v246
        %277 = vmatprep.subr.mxu0 0.0
        %278 = vmatpush1.msra.mxu0 %v245
        %279 = vmatprep.subr.mxu0 0.0
        %280 = vmatpush1.msra.mxu0 %v244
        %281 = vmatprep.subr.mxu0 0.0
        %282 = vmatpush1.msra.mxu0 %v243
        %283 = vmatprep.subr.mxu0 0.0
        %284 = vmatpush2.msra.mxu0 0.0
        %285 = vmatprep.subr.mxu0 0.0
        %286 = vmatpush2.msra.mxu0 0.0
        %287 = vmatprep.subr.mxu0 0.0
        %288 = vmatpush2.msra.mxu0 0.0
        %289 = vmatprep.subr.mxu0 0.0
        %290 = vmatpush2.msra.mxu0 0.0
        %291 = vmatprep.subr.mxu0 0.0
        %292 = vmatpush2.msra.mxu0 0.0
        %293 = vmatprep.subr.mxu0 0.0
        %294 = vmatpush2.msra.mxu0 0.0
        %295 = vmatprep.subr.mxu0 0.0
        %296 = vmatpush2.msra.mxu0 0.0
        %297 = vmatprep.subr.mxu0 0.0
        %298 = vmatpush2.msra.mxu0 0.0
        %299 = vmatprep.subr.mxu0 0.0
        %300 = vmatpush2.msra.mxu0 0.0
        %301 = vmatprep.subr.mxu0 0.0
        %302 = vmatpush2.msra.mxu0 0.0
        %303 = vmatprep.subr.mxu0 0.0
        %304 = vmatpush2.msra.mxu0 0.0
        %305 = vmatprep.subr.mxu0 0.0
        %306 = vmatpush2.msra.mxu0 0.0
        %307 = vmatprep.subr.mxu0 0.0
        %308 = vmatpush2.msra.mxu0 0.0
        %309 = vmatprep.subr.mxu0 0.0
        %310 = vmatpush2.msra.mxu0 0.0
        %311 = vmatprep.subr.mxu0 0.0
        %312 = vmatpush2.msra.mxu0 0.0
        %313 = vmatprep.subr.mxu0 0.0
        %314 = vmatpush2.msra.mxu0 0.0
        %315 = vmatprep.mubr.f32.mxu0 0.0
        %316 = vmatmul.mubr.f32.gmra.mxu0 %v249
        %v317 = vpop.f32.mrf.mxu0
        %v318 = vadd.f32 0.0, %v317
        %v319 = vpop.f32.mrf.mxu0
        %320 = vdwg.mxu0
        %322 = vrot.lane.b32.xlu0 %v318, 124
        %v323 = vpop.permute.xlu0 %322
        %325 = vrot.lane.b32.xlu0 %v318, 120
        %v326 = vpop.permute.xlu0 %325
        %328 = vrot.lane.b32.xlu0 %v318, 116
        %v329 = vpop.permute.xlu0 %328
        %331 = vrot.lane.b32.xlu0 %v318, 112
        %v332 = vpop.permute.xlu0 %331
        %334 = vrot.lane.b32.xlu0 %v318, 108
        %v335 = vpop.permute.xlu0 %334
        %337 = vrot.lane.b32.xlu0 %v318, 104
        %v338 = vpop.permute.xlu0 %337
        %340 = vrot.lane.b32.xlu0 %v318, 100
        %v341 = vpop.permute.xlu0 %340
        %v343 = vcombine.low %v318, %v326
        %v344 = vcombine.high %v318, %v326
        %v346 = vunpack.c.l.s4 1983009808
        %v347 = vunpack.c.0.s8 %v346
        %v348 = vlaneseq
        %v349 = vshrl.u32 %v348, 7
        %v350 = vsub.s32 %v347, %v349
        %v351 = vrot.slane %v343, %v350
        %v353 = vunpack.c.l.s4 1983009808
        %v354 = vunpack.c.0.s8 %v353
        %v355 = vlaneseq
        %v356 = vshrl.u32 %v355, 7
        %v357 = vsub.s32 %v354, %v356
        %v358 = vrot.slane %v344, %v357
        %v359 = vcombine.low %v323, %v329
        %v360 = vcombine.high %v323, %v329
        %v362 = vunpack.c.l.s4 1983009808
        %v363 = vunpack.c.0.s8 %v362
        %v364 = vlaneseq
        %v365 = vshrl.u32 %v364, 7
        %v366 = vsub.s32 %v363, %v365
        %v367 = vrot.slane %v359, %v366
        %v369 = vunpack.c.l.s4 1983009808
        %v370 = vunpack.c.0.s8 %v369
        %v371 = vlaneseq
        %v372 = vshrl.u32 %v371, 7
        %v373 = vsub.s32 %v370, %v372
        %v374 = vrot.slane %v360, %v373
        %v375 = vcombine.low %v332, %v338
        %v376 = vcombine.high %v332, %v338
        %v378 = vunpack.c.l.s4 1983009808
        %v379 = vunpack.c.0.s8 %v378
        %v380 = vlaneseq
        %v381 = vshrl.u32 %v380, 7
        %v382 = vsub.s32 %v379, %v381
        %v383 = vrot.slane %v375, %v382
        %v385 = vunpack.c.l.s4 1983009808
        %v386 = vunpack.c.0.s8 %v385
        %v387 = vlaneseq
        %v388 = vshrl.u32 %v387, 7
        %v389 = vsub.s32 %v386, %v388
        %v390 = vrot.slane %v376, %v389
        %v391 = vcombine.low %v335, %v341
        %v392 = vcombine.high %v335, %v341
        %v394 = vunpack.c.l.s4 1983009808
        %v395 = vunpack.c.0.s8 %v394
        %v396 = vlaneseq
        %v397 = vshrl.u32 %v396, 7
        %v398 = vsub.s32 %v395, %v397
        %v399 = vrot.slane %v391, %v398
        %v401 = vunpack.c.l.s4 1983009808
        %v402 = vunpack.c.0.s8 %v401
        %v403 = vlaneseq
        %v404 = vshrl.u32 %v403, 7
        %v405 = vsub.s32 %v402, %v404
        %v406 = vrot.slane %v392, %v405
        %v407 = vcombine.low %v351, %v367
        %v408 = vcombine.high %v351, %v367
        %v410 = vunpack.c.l.s4 1934713408
        %v411 = vunpack.c.0.s8 %v410
        %v412 = vlaneseq
        %v413 = vshrl.u32 %v412, 7
        %v414 = vsub.s32 %v411, %v413
        %v415 = vrot.slane %v407, %v414
        %v417 = vunpack.c.l.s4 1934713408
        %v418 = vunpack.c.0.s8 %v417
        %v419 = vlaneseq
        %v420 = vshrl.u32 %v419, 7
        %v421 = vsub.s32 %v418, %v420
        %v422 = vrot.slane %v408, %v421
        %v423 = vcombine.low %v358, %v374
        %v424 = vcombine.high %v358, %v374
        %v426 = vunpack.c.l.s4 1934713408
        %v427 = vunpack.c.0.s8 %v426
        %v428 = vlaneseq
        %v429 = vshrl.u32 %v428, 7
        %v430 = vsub.s32 %v427, %v429
        %v431 = vrot.slane %v423, %v430
        %v433 = vunpack.c.l.s4 1934713408
        %v434 = vunpack.c.0.s8 %v433
        %v435 = vlaneseq
        %v436 = vshrl.u32 %v435, 7
        %v437 = vsub.s32 %v434, %v436
        %v438 = vrot.slane %v424, %v437
        %v439 = vcombine.low %v383, %v399
        %v440 = vcombine.high %v383, %v399
        %v442 = vunpack.c.l.s4 1934713408
        %v443 = vunpack.c.0.s8 %v442
        %v444 = vlaneseq
        %v445 = vshrl.u32 %v444, 7
        %v446 = vsub.s32 %v443, %v445
        %v447 = vrot.slane %v439, %v446
        %v449 = vunpack.c.l.s4 1934713408
        %v450 = vunpack.c.0.s8 %v449
        %v451 = vlaneseq
        %v452 = vshrl.u32 %v451, 7
        %v453 = vsub.s32 %v450, %v452
        %v454 = vrot.slane %v440, %v453
        %v455 = vcombine.low %v390, %v406
        %v456 = vcombine.high %v390, %v406
        %v458 = vunpack.c.l.s4 1934713408
        %v459 = vunpack.c.0.s8 %v458
        %v460 = vlaneseq
        %v461 = vshrl.u32 %v460, 7
        %v462 = vsub.s32 %v459, %v461
        %v463 = vrot.slane %v455, %v462
        %v465 = vunpack.c.l.s4 1934713408
        %v466 = vunpack.c.0.s8 %v465
        %v467 = vlaneseq
        %v468 = vshrl.u32 %v467, 7
        %v469 = vsub.s32 %v466, %v468
        %v470 = vrot.slane %v456, %v469
        %v471 = vcombine.low %v415, %v447
        %v472 = vcombine.high %v415, %v447
        %v473 = vcombine.low %v422, %v454
        %v474 = vcombine.high %v422, %v454
        %v475 = vcombine.low %v431, %v463
        %v476 = vcombine.high %v431, %v463
        %v477 = vcombine.low %v438, %v470
        %v478 = vcombine.high %v438, %v470
        %v479 = vcombine.low %v471, %v473
        %v480 = vcombine.high %v471, %v473
        %v482 = vunpack.c.l.s4 1983009808
        %v483 = vunpack.c.0.s8 %v482
        %v484 = vlaneseq
        %v485 = vshrl.u32 %v484, 7
        %v486 = vsub.s32 %v483, %v485
        %v487 = vrot.slane %v479, %v486
        %v489 = vunpack.c.l.s4 1983009808
        %v490 = vunpack.c.0.s8 %v489
        %v491 = vlaneseq
        %v492 = vshrl.u32 %v491, 7
        %v493 = vsub.s32 %v490, %v492
        %v494 = vrot.slane %v480, %v493
        %v495 = vcombine.low %v472, %v474
        %v496 = vcombine.high %v472, %v474
        %v498 = vunpack.c.l.s4 1983009808
        %v499 = vunpack.c.0.s8 %v498
        %v500 = vlaneseq
        %v501 = vshrl.u32 %v500, 7
        %v502 = vsub.s32 %v499, %v501
        %v503 = vrot.slane %v495, %v502
        %v505 = vunpack.c.l.s4 1983009808
        %v506 = vunpack.c.0.s8 %v505
        %v507 = vlaneseq
        %v508 = vshrl.u32 %v507, 7
        %v509 = vsub.s32 %v506, %v508
        %v510 = vrot.slane %v496, %v509
        %v511 = vcombine.low %v475, %v477
        %v512 = vcombine.high %v475, %v477
        %v514 = vunpack.c.l.s4 1983009808
        %v515 = vunpack.c.0.s8 %v514
        %v516 = vlaneseq
        %v517 = vshrl.u32 %v516, 7
        %v518 = vsub.s32 %v515, %v517
        %v519 = vrot.slane %v511, %v518
        %v521 = vunpack.c.l.s4 1983009808
        %v522 = vunpack.c.0.s8 %v521
        %v523 = vlaneseq
        %v524 = vshrl.u32 %v523, 7
        %v525 = vsub.s32 %v522, %v524
        %v526 = vrot.slane %v512, %v525
        %v527 = vcombine.low %v476, %v478
        %v528 = vcombine.high %v476, %v478
        %v530 = vunpack.c.l.s4 1983009808
        %v531 = vunpack.c.0.s8 %v530
        %v532 = vlaneseq
        %v533 = vshrl.u32 %v532, 7
        %v534 = vsub.s32 %v531, %v533
        %v535 = vrot.slane %v527, %v534
        %v537 = vunpack.c.l.s4 1983009808
        %v538 = vunpack.c.0.s8 %v537
        %v539 = vlaneseq
        %v540 = vshrl.u32 %v539, 7
        %v541 = vsub.s32 %v538, %v540
        %v542 = vrot.slane %v528, %v541
        %v543 = vcombine.low %v487, %v503
        %v544 = vcombine.high %v487, %v503
        %v546 = vunpack.c.l.s4 1934713408
        %v547 = vunpack.c.0.s8 %v546
        %v548 = vlaneseq
        %v549 = vshrl.u32 %v548, 7
        %v550 = vsub.s32 %v547, %v549
        %v551 = vrot.slane %v543, %v550
        %v553 = vunpack.c.l.s4 1934713408
        %v554 = vunpack.c.0.s8 %v553
        %v555 = vlaneseq
        %v556 = vshrl.u32 %v555, 7
        %v557 = vsub.s32 %v554, %v556
        %v558 = vrot.slane %v544, %v557
        %v559 = vcombine.low %v494, %v510
        %v560 = vcombine.high %v494, %v510
        %v562 = vunpack.c.l.s4 1934713408
        %v563 = vunpack.c.0.s8 %v562
        %v564 = vlaneseq
        %v565 = vshrl.u32 %v564, 7
        %v566 = vsub.s32 %v563, %v565
        %v567 = vrot.slane %v559, %v566
        %v569 = vunpack.c.l.s4 1934713408
        %v570 = vunpack.c.0.s8 %v569
        %v571 = vlaneseq
        %v572 = vshrl.u32 %v571, 7
        %v573 = vsub.s32 %v570, %v572
        %v574 = vrot.slane %v560, %v573
        %v575 = vcombine.low %v519, %v535
        %v576 = vcombine.high %v519, %v535
        %v578 = vunpack.c.l.s4 1934713408
        %v579 = vunpack.c.0.s8 %v578
        %v580 = vlaneseq
        %v581 = vshrl.u32 %v580, 7
        %v582 = vsub.s32 %v579, %v581
        %v583 = vrot.slane %v575, %v582
        %v585 = vunpack.c.l.s4 1934713408
        %v586 = vunpack.c.0.s8 %v585
        %v587 = vlaneseq
        %v588 = vshrl.u32 %v587, 7
        %v589 = vsub.s32 %v586, %v588
        %v590 = vrot.slane %v576, %v589
        %v591 = vcombine.low %v526, %v542
        %v592 = vcombine.high %v526, %v542
        %v594 = vunpack.c.l.s4 1934713408
        %v595 = vunpack.c.0.s8 %v594
        %v596 = vlaneseq
        %v597 = vshrl.u32 %v596, 7
        %v598 = vsub.s32 %v595, %v597
        %v599 = vrot.slane %v591, %v598
        %v601 = vunpack.c.l.s4 1934713408
        %v602 = vunpack.c.0.s8 %v601
        %v603 = vlaneseq
        %v604 = vshrl.u32 %v603, 7
        %v605 = vsub.s32 %v602, %v604
        %v606 = vrot.slane %v592, %v605
        %v607 = vcombine.low %v551, %v583
        %v608 = vcombine.high %v551, %v583
        %v609 = vcombine.low %v558, %v590
        %v610 = vcombine.high %v558, %v590
        %v611 = vcombine.low %v567, %v599
        %v612 = vcombine.high %v567, %v599
        %v613 = vcombine.low %v574, %v606
        %v614 = vcombine.high %v574, %v606
        %615 = vrot.lane.b32.xlu0 %v318, 96
        %v616 = vpop.permute.xlu0 %615
        %617 = vrot.lane.b32.xlu0 %v323, 96
        %v618 = vpop.permute.xlu0 %617
        %619 = vrot.lane.b32.xlu0 %v326, 96
        %v620 = vpop.permute.xlu0 %619
        %621 = vrot.lane.b32.xlu0 %v329, 96
        %v622 = vpop.permute.xlu0 %621
        %623 = vrot.lane.b32.xlu0 %v332, 96
        %v624 = vpop.permute.xlu0 %623
        %625 = vrot.lane.b32.xlu0 %v335, 96
        %v626 = vpop.permute.xlu0 %625
        %627 = vrot.lane.b32.xlu0 %v338, 96
        %v628 = vpop.permute.xlu0 %627
        %629 = vrot.lane.b32.xlu0 %v341, 96
        %v630 = vpop.permute.xlu0 %629
        %v639 = vcombine.low %v616, %v620
        %v640 = vcombine.high %v616, %v620
        %v642 = vunpack.c.l.s4 1983009808
        %v643 = vunpack.c.0.s8 %v642
        %v644 = vlaneseq
        %v645 = vshrl.u32 %v644, 7
        %v646 = vsub.s32 %v643, %v645
        %v647 = vrot.slane %v639, %v646
        %v649 = vunpack.c.l.s4 1983009808
        %v650 = vunpack.c.0.s8 %v649
        %v651 = vlaneseq
        %v652 = vshrl.u32 %v651, 7
        %v653 = vsub.s32 %v650, %v652
        %v654 = vrot.slane %v640, %v653
        %v655 = vcombine.low %v618, %v622
        %v656 = vcombine.high %v618, %v622
        %v658 = vunpack.c.l.s4 1983009808
        %v659 = vunpack.c.0.s8 %v658
        %v660 = vlaneseq
        %v661 = vshrl.u32 %v660, 7
        %v662 = vsub.s32 %v659, %v661
        %v663 = vrot.slane %v655, %v662
        %v665 = vunpack.c.l.s4 1983009808
        %v666 = vunpack.c.0.s8 %v665
        %v667 = vlaneseq
        %v668 = vshrl.u32 %v667, 7
        %v669 = vsub.s32 %v666, %v668
        %v670 = vrot.slane %v656, %v669
        %v671 = vcombine.low %v624, %v628
        %v672 = vcombine.high %v624, %v628
        %v674 = vunpack.c.l.s4 1983009808
        %v675 = vunpack.c.0.s8 %v674
        %v676 = vlaneseq
        %v677 = vshrl.u32 %v676, 7
        %v678 = vsub.s32 %v675, %v677
        %v679 = vrot.slane %v671, %v678
        %v681 = vunpack.c.l.s4 1983009808
        %v682 = vunpack.c.0.s8 %v681
        %v683 = vlaneseq
        %v684 = vshrl.u32 %v683, 7
        %v685 = vsub.s32 %v682, %v684
        %v686 = vrot.slane %v672, %v685
        %v687 = vcombine.low %v626, %v630
        %v688 = vcombine.high %v626, %v630
        %v690 = vunpack.c.l.s4 1983009808
        %v691 = vunpack.c.0.s8 %v690
        %v692 = vlaneseq
        %v693 = vshrl.u32 %v692, 7
        %v694 = vsub.s32 %v691, %v693
        %v695 = vrot.slane %v687, %v694
        %v697 = vunpack.c.l.s4 1983009808
        %v698 = vunpack.c.0.s8 %v697
        %v699 = vlaneseq
        %v700 = vshrl.u32 %v699, 7
        %v701 = vsub.s32 %v698, %v700
        %v702 = vrot.slane %v688, %v701
        %v703 = vcombine.low %v647, %v663
        %v704 = vcombine.high %v647, %v663
        %v706 = vunpack.c.l.s4 1934713408
        %v707 = vunpack.c.0.s8 %v706
        %v708 = vlaneseq
        %v709 = vshrl.u32 %v708, 7
        %v710 = vsub.s32 %v707, %v709
        %v711 = vrot.slane %v703, %v710
        %v713 = vunpack.c.l.s4 1934713408
        %v714 = vunpack.c.0.s8 %v713
        %v715 = vlaneseq
        %v716 = vshrl.u32 %v715, 7
        %v717 = vsub.s32 %v714, %v716
        %v718 = vrot.slane %v704, %v717
        %v719 = vcombine.low %v654, %v670
        %v720 = vcombine.high %v654, %v670
        %v722 = vunpack.c.l.s4 1934713408
        %v723 = vunpack.c.0.s8 %v722
        %v724 = vlaneseq
        %v725 = vshrl.u32 %v724, 7
        %v726 = vsub.s32 %v723, %v725
        %v727 = vrot.slane %v719, %v726
        %v729 = vunpack.c.l.s4 1934713408
        %v730 = vunpack.c.0.s8 %v729
        %v731 = vlaneseq
        %v732 = vshrl.u32 %v731, 7
        %v733 = vsub.s32 %v730, %v732
        %v734 = vrot.slane %v720, %v733
        %v735 = vcombine.low %v679, %v695
        %v736 = vcombine.high %v679, %v695
        %v738 = vunpack.c.l.s4 1934713408
        %v739 = vunpack.c.0.s8 %v738
        %v740 = vlaneseq
        %v741 = vshrl.u32 %v740, 7
        %v742 = vsub.s32 %v739, %v741
        %v743 = vrot.slane %v735, %v742
        %v745 = vunpack.c.l.s4 1934713408
        %v746 = vunpack.c.0.s8 %v745
        %v747 = vlaneseq
        %v748 = vshrl.u32 %v747, 7
        %v749 = vsub.s32 %v746, %v748
        %v750 = vrot.slane %v736, %v749
        %v751 = vcombine.low %v686, %v702
        %v752 = vcombine.high %v686, %v702
        %v754 = vunpack.c.l.s4 1934713408
        %v755 = vunpack.c.0.s8 %v754
        %v756 = vlaneseq
        %v757 = vshrl.u32 %v756, 7
        %v758 = vsub.s32 %v755, %v757
        %v759 = vrot.slane %v751, %v758
        %v761 = vunpack.c.l.s4 1934713408
        %v762 = vunpack.c.0.s8 %v761
        %v763 = vlaneseq
        %v764 = vshrl.u32 %v763, 7
        %v765 = vsub.s32 %v762, %v764
        %v766 = vrot.slane %v752, %v765
        %v767 = vcombine.low %v711, %v743
        %v768 = vcombine.high %v711, %v743
        %v769 = vcombine.low %v718, %v750
        %v770 = vcombine.high %v718, %v750
        %v771 = vcombine.low %v727, %v759
        %v772 = vcombine.high %v727, %v759
        %v773 = vcombine.low %v734, %v766
        %v774 = vcombine.high %v734, %v766
        %v775 = vcombine.low %v767, %v769
        %v776 = vcombine.high %v767, %v769
        %v778 = vunpack.c.l.s4 1983009808
        %v779 = vunpack.c.0.s8 %v778
        %v780 = vlaneseq
        %v781 = vshrl.u32 %v780, 7
        %v782 = vsub.s32 %v779, %v781
        %v783 = vrot.slane %v775, %v782
        %v785 = vunpack.c.l.s4 1983009808
        %v786 = vunpack.c.0.s8 %v785
        %v787 = vlaneseq
        %v788 = vshrl.u32 %v787, 7
        %v789 = vsub.s32 %v786, %v788
        %v790 = vrot.slane %v776, %v789
        %v791 = vcombine.low %v768, %v770
        %v792 = vcombine.high %v768, %v770
        %v794 = vunpack.c.l.s4 1983009808
        %v795 = vunpack.c.0.s8 %v794
        %v796 = vlaneseq
        %v797 = vshrl.u32 %v796, 7
        %v798 = vsub.s32 %v795, %v797
        %v799 = vrot.slane %v791, %v798
        %v801 = vunpack.c.l.s4 1983009808
        %v802 = vunpack.c.0.s8 %v801
        %v803 = vlaneseq
        %v804 = vshrl.u32 %v803, 7
        %v805 = vsub.s32 %v802, %v804
        %v806 = vrot.slane %v792, %v805
        %v807 = vcombine.low %v771, %v773
        %v808 = vcombine.high %v771, %v773
        %v810 = vunpack.c.l.s4 1983009808
        %v811 = vunpack.c.0.s8 %v810
        %v812 = vlaneseq
        %v813 = vshrl.u32 %v812, 7
        %v814 = vsub.s32 %v811, %v813
        %v815 = vrot.slane %v807, %v814
        %v817 = vunpack.c.l.s4 1983009808
        %v818 = vunpack.c.0.s8 %v817
        %v819 = vlaneseq
        %v820 = vshrl.u32 %v819, 7
        %v821 = vsub.s32 %v818, %v820
        %v822 = vrot.slane %v808, %v821
        %v823 = vcombine.low %v772, %v774
        %v824 = vcombine.high %v772, %v774
        %v826 = vunpack.c.l.s4 1983009808
        %v827 = vunpack.c.0.s8 %v826
        %v828 = vlaneseq
        %v829 = vshrl.u32 %v828, 7
        %v830 = vsub.s32 %v827, %v829
        %v831 = vrot.slane %v823, %v830
        %v833 = vunpack.c.l.s4 1983009808
        %v834 = vunpack.c.0.s8 %v833
        %v835 = vlaneseq
        %v836 = vshrl.u32 %v835, 7
        %v837 = vsub.s32 %v834, %v836
        %v838 = vrot.slane %v824, %v837
        %v839 = vcombine.low %v783, %v799
        %v840 = vcombine.high %v783, %v799
        %v842 = vunpack.c.l.s4 1934713408
        %v843 = vunpack.c.0.s8 %v842
        %v844 = vlaneseq
        %v845 = vshrl.u32 %v844, 7
        %v846 = vsub.s32 %v843, %v845
        %v847 = vrot.slane %v839, %v846
        %v849 = vunpack.c.l.s4 1934713408
        %v850 = vunpack.c.0.s8 %v849
        %v851 = vlaneseq
        %v852 = vshrl.u32 %v851, 7
        %v853 = vsub.s32 %v850, %v852
        %v854 = vrot.slane %v840, %v853
        %v855 = vcombine.low %v790, %v806
        %v856 = vcombine.high %v790, %v806
        %v858 = vunpack.c.l.s4 1934713408
        %v859 = vunpack.c.0.s8 %v858
        %v860 = vlaneseq
        %v861 = vshrl.u32 %v860, 7
        %v862 = vsub.s32 %v859, %v861
        %v863 = vrot.slane %v855, %v862
        %v865 = vunpack.c.l.s4 1934713408
        %v866 = vunpack.c.0.s8 %v865
        %v867 = vlaneseq
        %v868 = vshrl.u32 %v867, 7
        %v869 = vsub.s32 %v866, %v868
        %v870 = vrot.slane %v856, %v869
        %v871 = vcombine.low %v815, %v831
        %v872 = vcombine.high %v815, %v831
        %v874 = vunpack.c.l.s4 1934713408
        %v875 = vunpack.c.0.s8 %v874
        %v876 = vlaneseq
        %v877 = vshrl.u32 %v876, 7
        %v878 = vsub.s32 %v875, %v877
        %v879 = vrot.slane %v871, %v878
        %v881 = vunpack.c.l.s4 1934713408
        %v882 = vunpack.c.0.s8 %v881
        %v883 = vlaneseq
        %v884 = vshrl.u32 %v883, 7
        %v885 = vsub.s32 %v882, %v884
        %v886 = vrot.slane %v872, %v885
        %v887 = vcombine.low %v822, %v838
        %v888 = vcombine.high %v822, %v838
        %v890 = vunpack.c.l.s4 1934713408
        %v891 = vunpack.c.0.s8 %v890
        %v892 = vlaneseq
        %v893 = vshrl.u32 %v892, 7
        %v894 = vsub.s32 %v891, %v893
        %v895 = vrot.slane %v887, %v894
        %v897 = vunpack.c.l.s4 1934713408
        %v898 = vunpack.c.0.s8 %v897
        %v899 = vlaneseq
        %v900 = vshrl.u32 %v899, 7
        %v901 = vsub.s32 %v898, %v900
        %v902 = vrot.slane %v888, %v901
        %v903 = vcombine.low %v847, %v879
        %v904 = vcombine.high %v847, %v879
        %v905 = vcombine.low %v854, %v886
        %v906 = vcombine.high %v854, %v886
        %v907 = vcombine.low %v863, %v895
        %v908 = vcombine.high %v863, %v895
        %v909 = vcombine.low %v870, %v902
        %v910 = vcombine.high %v870, %v902
        %911 = vrot.lane.b32.xlu0 %v318, 64
        %v912 = vpop.permute.xlu0 %911
        %913 = vrot.lane.b32.xlu0 %v323, 64
        %v914 = vpop.permute.xlu0 %913
        %915 = vrot.lane.b32.xlu0 %v326, 64
        %v916 = vpop.permute.xlu0 %915
        %917 = vrot.lane.b32.xlu0 %v329, 64
        %v918 = vpop.permute.xlu0 %917
        %919 = vrot.lane.b32.xlu0 %v332, 64
        %v920 = vpop.permute.xlu0 %919
        %921 = vrot.lane.b32.xlu0 %v335, 64
        %v922 = vpop.permute.xlu0 %921
        %923 = vrot.lane.b32.xlu0 %v338, 64
        %v924 = vpop.permute.xlu0 %923
        %925 = vrot.lane.b32.xlu0 %v341, 64
        %v926 = vpop.permute.xlu0 %925
        %v935 = vcombine.low %v912, %v916
        %v936 = vcombine.high %v912, %v916
        %v938 = vunpack.c.l.s4 1983009808
        %v939 = vunpack.c.0.s8 %v938
        %v940 = vlaneseq
        %v941 = vshrl.u32 %v940, 7
        %v942 = vsub.s32 %v939, %v941
        %v943 = vrot.slane %v935, %v942
        %v945 = vunpack.c.l.s4 1983009808
        %v946 = vunpack.c.0.s8 %v945
        %v947 = vlaneseq
        %v948 = vshrl.u32 %v947, 7
        %v949 = vsub.s32 %v946, %v948
        %v950 = vrot.slane %v936, %v949
        %v951 = vcombine.low %v914, %v918
        %v952 = vcombine.high %v914, %v918
        %v954 = vunpack.c.l.s4 1983009808
        %v955 = vunpack.c.0.s8 %v954
        %v956 = vlaneseq
        %v957 = vshrl.u32 %v956, 7
        %v958 = vsub.s32 %v955, %v957
        %v959 = vrot.slane %v951, %v958
        %v961 = vunpack.c.l.s4 1983009808
        %v962 = vunpack.c.0.s8 %v961
        %v963 = vlaneseq
        %v964 = vshrl.u32 %v963, 7
        %v965 = vsub.s32 %v962, %v964
        %v966 = vrot.slane %v952, %v965
        %v967 = vcombine.low %v920, %v924
        %v968 = vcombine.high %v920, %v924
        %v970 = vunpack.c.l.s4 1983009808
        %v971 = vunpack.c.0.s8 %v970
        %v972 = vlaneseq
        %v973 = vshrl.u32 %v972, 7
        %v974 = vsub.s32 %v971, %v973
        %v975 = vrot.slane %v967, %v974
        %v977 = vunpack.c.l.s4 1983009808
        %v978 = vunpack.c.0.s8 %v977
        %v979 = vlaneseq
        %v980 = vshrl.u32 %v979, 7
        %v981 = vsub.s32 %v978, %v980
        %v982 = vrot.slane %v968, %v981
        %v983 = vcombine.low %v922, %v926
        %v984 = vcombine.high %v922, %v926
        %v986 = vunpack.c.l.s4 1983009808
        %v987 = vunpack.c.0.s8 %v986
        %v988 = vlaneseq
        %v989 = vshrl.u32 %v988, 7
        %v990 = vsub.s32 %v987, %v989
        %v991 = vrot.slane %v983, %v990
        %v993 = vunpack.c.l.s4 1983009808
        %v994 = vunpack.c.0.s8 %v993
        %v995 = vlaneseq
        %v996 = vshrl.u32 %v995, 7
        %v997 = vsub.s32 %v994, %v996
        %v998 = vrot.slane %v984, %v997
        %v999 = vcombine.low %v943, %v959
        %v1000 = vcombine.high %v943, %v959
        %v1002 = vunpack.c.l.s4 1934713408
        %v1003 = vunpack.c.0.s8 %v1002
        %v1004 = vlaneseq
        %v1005 = vshrl.u32 %v1004, 7
        %v1006 = vsub.s32 %v1003, %v1005
        %v1007 = vrot.slane %v999, %v1006
        %v1009 = vunpack.c.l.s4 1934713408
        %v1010 = vunpack.c.0.s8 %v1009
        %v1011 = vlaneseq
        %v1012 = vshrl.u32 %v1011, 7
        %v1013 = vsub.s32 %v1010, %v1012
        %v1014 = vrot.slane %v1000, %v1013
        %v1015 = vcombine.low %v950, %v966
        %v1016 = vcombine.high %v950, %v966
        %v1018 = vunpack.c.l.s4 1934713408
        %v1019 = vunpack.c.0.s8 %v1018
        %v1020 = vlaneseq
        %v1021 = vshrl.u32 %v1020, 7
        %v1022 = vsub.s32 %v1019, %v1021
        %v1023 = vrot.slane %v1015, %v1022
        %v1025 = vunpack.c.l.s4 1934713408
        %v1026 = vunpack.c.0.s8 %v1025
        %v1027 = vlaneseq
        %v1028 = vshrl.u32 %v1027, 7
        %v1029 = vsub.s32 %v1026, %v1028
        %v1030 = vrot.slane %v1016, %v1029
        %v1031 = vcombine.low %v975, %v991
        %v1032 = vcombine.high %v975, %v991
        %v1034 = vunpack.c.l.s4 1934713408
        %v1035 = vunpack.c.0.s8 %v1034
        %v1036 = vlaneseq
        %v1037 = vshrl.u32 %v1036, 7
        %v1038 = vsub.s32 %v1035, %v1037
        %v1039 = vrot.slane %v1031, %v1038
        %v1041 = vunpack.c.l.s4 1934713408
        %v1042 = vunpack.c.0.s8 %v1041
        %v1043 = vlaneseq
        %v1044 = vshrl.u32 %v1043, 7
        %v1045 = vsub.s32 %v1042, %v1044
        %v1046 = vrot.slane %v1032, %v1045
        %v1047 = vcombine.low %v982, %v998
        %v1048 = vcombine.high %v982, %v998
        %v1050 = vunpack.c.l.s4 1934713408
        %v1051 = vunpack.c.0.s8 %v1050
        %v1052 = vlaneseq
        %v1053 = vshrl.u32 %v1052, 7
        %v1054 = vsub.s32 %v1051, %v1053
        %v1055 = vrot.slane %v1047, %v1054
        %v1057 = vunpack.c.l.s4 1934713408
        %v1058 = vunpack.c.0.s8 %v1057
        %v1059 = vlaneseq
        %v1060 = vshrl.u32 %v1059, 7
        %v1061 = vsub.s32 %v1058, %v1060
        %v1062 = vrot.slane %v1048, %v1061
        %v1063 = vcombine.low %v1007, %v1039
        %v1064 = vcombine.high %v1007, %v1039
        %v1065 = vcombine.low %v1014, %v1046
        %v1066 = vcombine.high %v1014, %v1046
        %v1067 = vcombine.low %v1023, %v1055
        %v1068 = vcombine.high %v1023, %v1055
        %v1069 = vcombine.low %v1030, %v1062
        %v1070 = vcombine.high %v1030, %v1062
        %v1071 = vcombine.low %v1063, %v1065
        %v1072 = vcombine.high %v1063, %v1065
        %v1074 = vunpack.c.l.s4 1983009808
        %v1075 = vunpack.c.0.s8 %v1074
        %v1076 = vlaneseq
        %v1077 = vshrl.u32 %v1076, 7
        %v1078 = vsub.s32 %v1075, %v1077
        %v1079 = vrot.slane %v1071, %v1078
        %v1081 = vunpack.c.l.s4 1983009808
        %v1082 = vunpack.c.0.s8 %v1081
        %v1083 = vlaneseq
        %v1084 = vshrl.u32 %v1083, 7
        %v1085 = vsub.s32 %v1082, %v1084
        %v1086 = vrot.slane %v1072, %v1085
        %v1087 = vcombine.low %v1064, %v1066
        %v1088 = vcombine.high %v1064, %v1066
        %v1090 = vunpack.c.l.s4 1983009808
        %v1091 = vunpack.c.0.s8 %v1090
        %v1092 = vlaneseq
        %v1093 = vshrl.u32 %v1092, 7
        %v1094 = vsub.s32 %v1091, %v1093
        %v1095 = vrot.slane %v1087, %v1094
        %v1097 = vunpack.c.l.s4 1983009808
        %v1098 = vunpack.c.0.s8 %v1097
        %v1099 = vlaneseq
        %v1100 = vshrl.u32 %v1099, 7
        %v1101 = vsub.s32 %v1098, %v1100
        %v1102 = vrot.slane %v1088, %v1101
        %v1103 = vcombine.low %v1067, %v1069
        %v1104 = vcombine.high %v1067, %v1069
        %v1106 = vunpack.c.l.s4 1983009808
        %v1107 = vunpack.c.0.s8 %v1106
        %v1108 = vlaneseq
        %v1109 = vshrl.u32 %v1108, 7
        %v1110 = vsub.s32 %v1107, %v1109
        %v1111 = vrot.slane %v1103, %v1110
        %v1113 = vunpack.c.l.s4 1983009808
        %v1114 = vunpack.c.0.s8 %v1113
        %v1115 = vlaneseq
        %v1116 = vshrl.u32 %v1115, 7
        %v1117 = vsub.s32 %v1114, %v1116
        %v1118 = vrot.slane %v1104, %v1117
        %v1119 = vcombine.low %v1068, %v1070
        %v1120 = vcombine.high %v1068, %v1070
        %v1122 = vunpack.c.l.s4 1983009808
        %v1123 = vunpack.c.0.s8 %v1122
        %v1124 = vlaneseq
        %v1125 = vshrl.u32 %v1124, 7
        %v1126 = vsub.s32 %v1123, %v1125
        %v1127 = vrot.slane %v1119, %v1126
        %v1129 = vunpack.c.l.s4 1983009808
        %v1130 = vunpack.c.0.s8 %v1129
        %v1131 = vlaneseq
        %v1132 = vshrl.u32 %v1131, 7
        %v1133 = vsub.s32 %v1130, %v1132
        %v1134 = vrot.slane %v1120, %v1133
        %v1135 = vcombine.low %v1079, %v1095
        %v1136 = vcombine.high %v1079, %v1095
        %v1138 = vunpack.c.l.s4 1934713408
        %v1139 = vunpack.c.0.s8 %v1138
        %v1140 = vlaneseq
        %v1141 = vshrl.u32 %v1140, 7
        %v1142 = vsub.s32 %v1139, %v1141
        %v1143 = vrot.slane %v1135, %v1142
        %v1145 = vunpack.c.l.s4 1934713408
        %v1146 = vunpack.c.0.s8 %v1145
        %v1147 = vlaneseq
        %v1148 = vshrl.u32 %v1147, 7
        %v1149 = vsub.s32 %v1146, %v1148
        %v1150 = vrot.slane %v1136, %v1149
        %v1151 = vcombine.low %v1086, %v1102
        %v1152 = vcombine.high %v1086, %v1102
        %v1154 = vunpack.c.l.s4 1934713408
        %v1155 = vunpack.c.0.s8 %v1154
        %v1156 = vlaneseq
        %v1157 = vshrl.u32 %v1156, 7
        %v1158 = vsub.s32 %v1155, %v1157
        %v1159 = vrot.slane %v1151, %v1158
        %v1161 = vunpack.c.l.s4 1934713408
        %v1162 = vunpack.c.0.s8 %v1161
        %v1163 = vlaneseq
        %v1164 = vshrl.u32 %v1163, 7
        %v1165 = vsub.s32 %v1162, %v1164
        %v1166 = vrot.slane %v1152, %v1165
        %v1167 = vcombine.low %v1111, %v1127
        %v1168 = vcombine.high %v1111, %v1127
        %v1170 = vunpack.c.l.s4 1934713408
        %v1171 = vunpack.c.0.s8 %v1170
        %v1172 = vlaneseq
        %v1173 = vshrl.u32 %v1172, 7
        %v1174 = vsub.s32 %v1171, %v1173
        %v1175 = vrot.slane %v1167, %v1174
        %v1177 = vunpack.c.l.s4 1934713408
        %v1178 = vunpack.c.0.s8 %v1177
        %v1179 = vlaneseq
        %v1180 = vshrl.u32 %v1179, 7
        %v1181 = vsub.s32 %v1178, %v1180
        %v1182 = vrot.slane %v1168, %v1181
        %v1183 = vcombine.low %v1118, %v1134
        %v1184 = vcombine.high %v1118, %v1134
        %v1186 = vunpack.c.l.s4 1934713408
        %v1187 = vunpack.c.0.s8 %v1186
        %v1188 = vlaneseq
        %v1189 = vshrl.u32 %v1188, 7
        %v1190 = vsub.s32 %v1187, %v1189
        %v1191 = vrot.slane %v1183, %v1190
        %v1193 = vunpack.c.l.s4 1934713408
        %v1194 = vunpack.c.0.s8 %v1193
        %v1195 = vlaneseq
        %v1196 = vshrl.u32 %v1195, 7
        %v1197 = vsub.s32 %v1194, %v1196
        %v1198 = vrot.slane %v1184, %v1197
        %v1199 = vcombine.low %v1143, %v1175
        %v1200 = vcombine.high %v1143, %v1175
        %v1201 = vcombine.low %v1150, %v1182
        %v1202 = vcombine.high %v1150, %v1182
        %v1203 = vcombine.low %v1159, %v1191
        %v1204 = vcombine.high %v1159, %v1191
        %v1205 = vcombine.low %v1166, %v1198
        %v1206 = vcombine.high %v1166, %v1198
        %vm1207 = vcmask 31744
        %v1209 = vsel %vm1207, %v607, 0
        %v1212 = vsel %vm1207, %v903, 0
        %1214 = vmatprep.subr.mxu0 0.0
        %1215 = vmatpush1.xpose.msra.mxu0 0.0
        %1216 = vmatprep.subr.mxu0 0.0
        %1217 = vmatpush1.xpose.msra.mxu0 0.0
        %1218 = vmatprep.subr.mxu0 0.0
        %1219 = vmatpush1.xpose.msra.mxu0 0.0
        %1220 = vmatprep.subr.mxu0 0.0
        %1221 = vmatpush1.xpose.msra.mxu0 0.0
        %1222 = vmatprep.subr.mxu0 0.0
        %1223 = vmatpush1.xpose.msra.mxu0 0.0
        %1224 = vmatprep.subr.mxu0 0.0
        %1225 = vmatpush1.xpose.msra.mxu0 0.0
        %1226 = vmatprep.subr.mxu0 0.0
        %1227 = vmatpush1.xpose.msra.mxu0 0.0
        %1228 = vmatprep.subr.mxu0 0.0
        %1229 = vmatpush1.xpose.msra.mxu0 0.0
        %1230 = vmatprep.subr.mxu0 0.0
        %1231 = vmatpush1.xpose.msra.mxu0 0.0
        %1232 = vmatprep.subr.mxu0 0.0
        %1233 = vmatpush1.xpose.msra.mxu0 0.0
        %1234 = vmatprep.subr.mxu0 0.0
        %1235 = vmatpush1.xpose.msra.mxu0 0.0
        %1236 = vmatprep.subr.mxu0 0.0
        %1237 = vmatpush1.xpose.msra.mxu0 0.0
        %1238 = vmatprep.subr.mxu0 0.0
        %1239 = vmatpush1.xpose.msra.mxu0 0.0
        %1240 = vmatprep.subr.mxu0 0.0
        %1241 = vmatpush1.xpose.msra.mxu0 0.0
        %1242 = vmatprep.subr.mxu0 0.0
        %1243 = vmatpush1.xpose.msra.mxu0 0.0
        %1244 = vmatprep.subr.mxu0 0.0
        %1245 = vmatpush1.xpose.msra.mxu0 %v1212
        %1246 = vmatprep.subr.mxu0 0.0
        %1247 = vmatpush2.xpose.msra.mxu0 0.0
        %1248 = vmatprep.subr.mxu0 0.0
        %1249 = vmatpush2.xpose.msra.mxu0 0.0
        %1250 = vmatprep.subr.mxu0 0.0
        %1251 = vmatpush2.xpose.msra.mxu0 0.0
        %1252 = vmatprep.subr.mxu0 0.0
        %1253 = vmatpush2.xpose.msra.mxu0 0.0
        %1254 = vmatprep.subr.mxu0 0.0
        %1255 = vmatpush2.xpose.msra.mxu0 0.0
        %1256 = vmatprep.subr.mxu0 0.0
        %1257 = vmatpush2.xpose.msra.mxu0 0.0
        %1258 = vmatprep.subr.mxu0 0.0
        %1259 = vmatpush2.xpose.msra.mxu0 0.0
        %1260 = vmatprep.subr.mxu0 0.0
        %1261 = vmatpush2.xpose.msra.mxu0 0.0
        %1262 = vmatprep.subr.mxu0 0.0
        %1263 = vmatpush2.xpose.msra.mxu0 0.0
        %1264 = vmatprep.subr.mxu0 0.0
        %1265 = vmatpush2.xpose.msra.mxu0 0.0
        %1266 = vmatprep.subr.mxu0 0.0
        %1267 = vmatpush2.xpose.msra.mxu0 0.0
        %1268 = vmatprep.subr.mxu0 0.0
        %1269 = vmatpush2.xpose.msra.mxu0 0.0
        %1270 = vmatprep.subr.mxu0 0.0
        %1271 = vmatpush2.xpose.msra.mxu0 0.0
        %1272 = vmatprep.subr.mxu0 0.0
        %1273 = vmatpush2.xpose.msra.mxu0 0.0
        %1274 = vmatprep.subr.mxu0 0.0
        %1275 = vmatpush2.xpose.msra.mxu0 0.0
        %1276 = vmatprep.subr.mxu0 0.0
        %1277 = vmatpush2.xpose.msra.mxu0 0.0
        %1278 = vmatprep.mubr.f32.mxu0 0.0
        %1279 = vmatmul.mubr.f32.gmra.mxu0 %v1209
        %v1280 = vpop.f32.mrf.mxu0
        %v1281 = vadd.f32 0.0, %v1280
        %v1282 = vpop.f32.mrf.mxu0
        %1283 = vdwg.mxu0
        %v1285 = vsel %vm1207, %v608, 0
        %v1288 = vsel %vm1207, %v904, 0
        %1290 = vmatprep.subr.mxu0 0.0
        %1291 = vmatpush1.xpose.msra.mxu0 0.0
        %1292 = vmatprep.subr.mxu0 0.0
        %1293 = vmatpush1.xpose.msra.mxu0 0.0
        %1294 = vmatprep.subr.mxu0 0.0
        %1295 = vmatpush1.xpose.msra.mxu0 0.0
        %1296 = vmatprep.subr.mxu0 0.0
        %1297 = vmatpush1.xpose.msra.mxu0 0.0
        %1298 = vmatprep.subr.mxu0 0.0
        %1299 = vmatpush1.xpose.msra.mxu0 0.0
        %1300 = vmatprep.subr.mxu0 0.0
        %1301 = vmatpush1.xpose.msra.mxu0 0.0
        %1302 = vmatprep.subr.mxu0 0.0
        %1303 = vmatpush1.xpose.msra.mxu0 0.0
        %1304 = vmatprep.subr.mxu0 0.0
        %1305 = vmatpush1.xpose.msra.mxu0 0.0
        %1306 = vmatprep.subr.mxu0 0.0
        %1307 = vmatpush1.xpose.msra.mxu0 0.0
        %1308 = vmatprep.subr.mxu0 0.0
        %1309 = vmatpush1.xpose.msra.mxu0 0.0
        %1310 = vmatprep.subr.mxu0 0.0
        %1311 = vmatpush1.xpose.msra.mxu0 0.0
        %1312 = vmatprep.subr.mxu0 0.0
        %1313 = vmatpush1.xpose.msra.mxu0 0.0
        %1314 = vmatprep.subr.mxu0 0.0
        %1315 = vmatpush1.xpose.msra.mxu0 0.0
        %1316 = vmatprep.subr.mxu0 0.0
        %1317 = vmatpush1.xpose.msra.mxu0 0.0
        %1318 = vmatprep.subr.mxu0 0.0
        %1319 = vmatpush1.xpose.msra.mxu0 0.0
        %1320 = vmatprep.subr.mxu0 0.0
        %1321 = vmatpush1.xpose.msra.mxu0 %v1288
        %1322 = vmatprep.subr.mxu0 0.0
        %1323 = vmatpush2.xpose.msra.mxu0 0.0
        %1324 = vmatprep.subr.mxu0 0.0
        %1325 = vmatpush2.xpose.msra.mxu0 0.0
        %1326 = vmatprep.subr.mxu0 0.0
        %1327 = vmatpush2.xpose.msra.mxu0 0.0
        %1328 = vmatprep.subr.mxu0 0.0
        %1329 = vmatpush2.xpose.msra.mxu0 0.0
        %1330 = vmatprep.subr.mxu0 0.0
        %1331 = vmatpush2.xpose.msra.mxu0 0.0
        %1332 = vmatprep.subr.mxu0 0.0
        %1333 = vmatpush2.xpose.msra.mxu0 0.0
        %1334 = vmatprep.subr.mxu0 0.0
        %1335 = vmatpush2.xpose.msra.mxu0 0.0
        %1336 = vmatprep.subr.mxu0 0.0
        %1337 = vmatpush2.xpose.msra.mxu0 0.0
        %1338 = vmatprep.subr.mxu0 0.0
        %1339 = vmatpush2.xpose.msra.mxu0 0.0
        %1340 = vmatprep.subr.mxu0 0.0
        %1341 = vmatpush2.xpose.msra.mxu0 0.0
        %1342 = vmatprep.subr.mxu0 0.0
        %1343 = vmatpush2.xpose.msra.mxu0 0.0
        %1344 = vmatprep.subr.mxu0 0.0
        %1345 = vmatpush2.xpose.msra.mxu0 0.0
        %1346 = vmatprep.subr.mxu0 0.0
        %1347 = vmatpush2.xpose.msra.mxu0 0.0
        %1348 = vmatprep.subr.mxu0 0.0
        %1349 = vmatpush2.xpose.msra.mxu0 0.0
        %1350 = vmatprep.subr.mxu0 0.0
        %1351 = vmatpush2.xpose.msra.mxu0 0.0
        %1352 = vmatprep.subr.mxu0 0.0
        %1353 = vmatpush2.xpose.msra.mxu0 0.0
        %1354 = vmatprep.mubr.f32.mxu0 0.0
        %1355 = vmatmul.mubr.f32.gmra.mxu0 %v1285
        %v1356 = vpop.f32.mrf.mxu0
        %v1357 = vadd.f32 0.0, %v1356
        %v1358 = vpop.f32.mrf.mxu0
        %1359 = vdwg.mxu0
        %v1361 = vsel %vm1207, %v609, 0
        %v1364 = vsel %vm1207, %v905, 0
        %1366 = vmatprep.subr.mxu0 0.0
        %1367 = vmatpush1.xpose.msra.mxu0 0.0
        %1368 = vmatprep.subr.mxu0 0.0
        %1369 = vmatpush1.xpose.msra.mxu0 0.0
        %1370 = vmatprep.subr.mxu0 0.0
        %1371 = vmatpush1.xpose.msra.mxu0 0.0
        %1372 = vmatprep.subr.mxu0 0.0
        %1373 = vmatpush1.xpose.msra.mxu0 0.0
        %1374 = vmatprep.subr.mxu0 0.0
        %1375 = vmatpush1.xpose.msra.mxu0 0.0
        %1376 = vmatprep.subr.mxu0 0.0
        %1377 = vmatpush1.xpose.msra.mxu0 0.0
        %1378 = vmatprep.subr.mxu0 0.0
        %1379 = vmatpush1.xpose.msra.mxu0 0.0
        %1380 = vmatprep.subr.mxu0 0.0
        %1381 = vmatpush1.xpose.msra.mxu0 0.0
        %1382 = vmatprep.subr.mxu0 0.0
        %1383 = vmatpush1.xpose.msra.mxu0 0.0
        %1384 = vmatprep.subr.mxu0 0.0
        %1385 = vmatpush1.xpose.msra.mxu0 0.0
        %1386 = vmatprep.subr.mxu0 0.0
        %1387 = vmatpush1.xpose.msra.mxu0 0.0
        %1388 = vmatprep.subr.mxu0 0.0
        %1389 = vmatpush1.xpose.msra.mxu0 0.0
        %1390 = vmatprep.subr.mxu0 0.0
        %1391 = vmatpush1.xpose.msra.mxu0 0.0
        %1392 = vmatprep.subr.mxu0 0.0
        %1393 = vmatpush1.xpose.msra.mxu0 0.0
        %1394 = vmatprep.subr.mxu0 0.0
        %1395 = vmatpush1.xpose.msra.mxu0 0.0
        %1396 = vmatprep.subr.mxu0 0.0
        %1397 = vmatpush1.xpose.msra.mxu0 %v1364
        %1398 = vmatprep.subr.mxu0 0.0
        %1399 = vmatpush2.xpose.msra.mxu0 0.0
        %1400 = vmatprep.subr.mxu0 0.0
        %1401 = vmatpush2.xpose.msra.mxu0 0.0
        %1402 = vmatprep.subr.mxu0 0.0
        %1403 = vmatpush2.xpose.msra.mxu0 0.0
        %1404 = vmatprep.subr.mxu0 0.0
        %1405 = vmatpush2.xpose.msra.mxu0 0.0
        %1406 = vmatprep.subr.mxu0 0.0
        %1407 = vmatpush2.xpose.msra.mxu0 0.0
        %1408 = vmatprep.subr.mxu0 0.0
        %1409 = vmatpush2.xpose.msra.mxu0 0.0
        %1410 = vmatprep.subr.mxu0 0.0
        %1411 = vmatpush2.xpose.msra.mxu0 0.0
        %1412 = vmatprep.subr.mxu0 0.0
        %1413 = vmatpush2.xpose.msra.mxu0 0.0
        %1414 = vmatprep.subr.mxu0 0.0
        %1415 = vmatpush2.xpose.msra.mxu0 0.0
        %1416 = vmatprep.subr.mxu0 0.0
        %1417 = vmatpush2.xpose.msra.mxu0 0.0
        %1418 = vmatprep.subr.mxu0 0.0
        %1419 = vmatpush2.xpose.msra.mxu0 0.0
        %1420 = vmatprep.subr.mxu0 0.0
        %1421 = vmatpush2.xpose.msra.mxu0 0.0
        %1422 = vmatprep.subr.mxu0 0.0
        %1423 = vmatpush2.xpose.msra.mxu0 0.0
        %1424 = vmatprep.subr.mxu0 0.0
        %1425 = vmatpush2.xpose.msra.mxu0 0.0
        %1426 = vmatprep.subr.mxu0 0.0
        %1427 = vmatpush2.xpose.msra.mxu0 0.0
        %1428 = vmatprep.subr.mxu0 0.0
        %1429 = vmatpush2.xpose.msra.mxu0 0.0
        %1430 = vmatprep.mubr.f32.mxu0 0.0
        %1431 = vmatmul.mubr.f32.gmra.mxu0 %v1361
        %v1432 = vpop.f32.mrf.mxu0
        %v1433 = vadd.f32 0.0, %v1432
        %v1434 = vpop.f32.mrf.mxu0
        %1435 = vdwg.mxu0
        %v1437 = vsel %vm1207, %v610, 0
        %v1440 = vsel %vm1207, %v906, 0
        %1442 = vmatprep.subr.mxu0 0.0
        %1443 = vmatpush1.xpose.msra.mxu0 0.0
        %1444 = vmatprep.subr.mxu0 0.0
        %1445 = vmatpush1.xpose.msra.mxu0 0.0
        %1446 = vmatprep.subr.mxu0 0.0
        %1447 = vmatpush1.xpose.msra.mxu0 0.0
        %1448 = vmatprep.subr.mxu0 0.0
        %1449 = vmatpush1.xpose.msra.mxu0 0.0
        %1450 = vmatprep.subr.mxu0 0.0
        %1451 = vmatpush1.xpose.msra.mxu0 0.0
        %1452 = vmatprep.subr.mxu0 0.0
        %1453 = vmatpush1.xpose.msra.mxu0 0.0
        %1454 = vmatprep.subr.mxu0 0.0
        %1455 = vmatpush1.xpose.msra.mxu0 0.0
        %1456 = vmatprep.subr.mxu0 0.0
        %1457 = vmatpush1.xpose.msra.mxu0 0.0
        %1458 = vmatprep.subr.mxu0 0.0
        %1459 = vmatpush1.xpose.msra.mxu0 0.0
        %1460 = vmatprep.subr.mxu0 0.0
        %1461 = vmatpush1.xpose.msra.mxu0 0.0
        %1462 = vmatprep.subr.mxu0 0.0
        %1463 = vmatpush1.xpose.msra.mxu0 0.0
        %1464 = vmatprep.subr.mxu0 0.0
        %1465 = vmatpush1.xpose.msra.mxu0 0.0
        %1466 = vmatprep.subr.mxu0 0.0
        %1467 = vmatpush1.xpose.msra.mxu0 0.0
        %1468 = vmatprep.subr.mxu0 0.0
        %1469 = vmatpush1.xpose.msra.mxu0 0.0
        %1470 = vmatprep.subr.mxu0 0.0
        %1471 = vmatpush1.xpose.msra.mxu0 0.0
        %1472 = vmatprep.subr.mxu0 0.0
        %1473 = vmatpush1.xpose.msra.mxu0 %v1440
        %1474 = vmatprep.subr.mxu0 0.0
        %1475 = vmatpush2.xpose.msra.mxu0 0.0
        %1476 = vmatprep.subr.mxu0 0.0
        %1477 = vmatpush2.xpose.msra.mxu0 0.0
        %1478 = vmatprep.subr.mxu0 0.0
        %1479 = vmatpush2.xpose.msra.mxu0 0.0
        %1480 = vmatprep.subr.mxu0 0.0
        %1481 = vmatpush2.xpose.msra.mxu0 0.0
        %1482 = vmatprep.subr.mxu0 0.0
        %1483 = vmatpush2.xpose.msra.mxu0 0.0
        %1484 = vmatprep.subr.mxu0 0.0
        %1485 = vmatpush2.xpose.msra.mxu0 0.0
        %1486 = vmatprep.subr.mxu0 0.0
        %1487 = vmatpush2.xpose.msra.mxu0 0.0
        %1488 = vmatprep.subr.mxu0 0.0
        %1489 = vmatpush2.xpose.msra.mxu0 0.0
        %1490 = vmatprep.subr.mxu0 0.0
        %1491 = vmatpush2.xpose.msra.mxu0 0.0
        %1492 = vmatprep.subr.mxu0 0.0
        %1493 = vmatpush2.xpose.msra.mxu0 0.0
        %1494 = vmatprep.subr.mxu0 0.0
        %1495 = vmatpush2.xpose.msra.mxu0 0.0
        %1496 = vmatprep.subr.mxu0 0.0
        %1497 = vmatpush2.xpose.msra.mxu0 0.0
        %1498 = vmatprep.subr.mxu0 0.0
        %1499 = vmatpush2.xpose.msra.mxu0 0.0
        %1500 = vmatprep.subr.mxu0 0.0
        %1501 = vmatpush2.xpose.msra.mxu0 0.0
        %1502 = vmatprep.subr.mxu0 0.0
        %1503 = vmatpush2.xpose.msra.mxu0 0.0
        %1504 = vmatprep.subr.mxu0 0.0
        %1505 = vmatpush2.xpose.msra.mxu0 0.0
        %1506 = vmatprep.mubr.f32.mxu0 0.0
        %1507 = vmatmul.mubr.f32.gmra.mxu0 %v1437
        %v1508 = vpop.f32.mrf.mxu0
        %v1509 = vadd.f32 0.0, %v1508
        %v1510 = vpop.f32.mrf.mxu0
        %1511 = vdwg.mxu0
        %v1513 = vsel %vm1207, %v611, 0
        %v1516 = vsel %vm1207, %v907, 0
        %1518 = vmatprep.subr.mxu0 0.0
        %1519 = vmatpush1.xpose.msra.mxu0 0.0
        %1520 = vmatprep.subr.mxu0 0.0
        %1521 = vmatpush1.xpose.msra.mxu0 0.0
        %1522 = vmatprep.subr.mxu0 0.0
        %1523 = vmatpush1.xpose.msra.mxu0 0.0
        %1524 = vmatprep.subr.mxu0 0.0
        %1525 = vmatpush1.xpose.msra.mxu0 0.0
        %1526 = vmatprep.subr.mxu0 0.0
        %1527 = vmatpush1.xpose.msra.mxu0 0.0
        %1528 = vmatprep.subr.mxu0 0.0
        %1529 = vmatpush1.xpose.msra.mxu0 0.0
        %1530 = vmatprep.subr.mxu0 0.0
        %1531 = vmatpush1.xpose.msra.mxu0 0.0
        %1532 = vmatprep.subr.mxu0 0.0
        %1533 = vmatpush1.xpose.msra.mxu0 0.0
        %1534 = vmatprep.subr.mxu0 0.0
        %1535 = vmatpush1.xpose.msra.mxu0 0.0
        %1536 = vmatprep.subr.mxu0 0.0
        %1537 = vmatpush1.xpose.msra.mxu0 0.0
        %1538 = vmatprep.subr.mxu0 0.0
        %1539 = vmatpush1.xpose.msra.mxu0 0.0
        %1540 = vmatprep.subr.mxu0 0.0
        %1541 = vmatpush1.xpose.msra.mxu0 0.0
        %1542 = vmatprep.subr.mxu0 0.0
        %1543 = vmatpush1.xpose.msra.mxu0 0.0
        %1544 = vmatprep.subr.mxu0 0.0
        %1545 = vmatpush1.xpose.msra.mxu0 0.0
        %1546 = vmatprep.subr.mxu0 0.0
        %1547 = vmatpush1.xpose.msra.mxu0 0.0
        %1548 = vmatprep.subr.mxu0 0.0
        %1549 = vmatpush1.xpose.msra.mxu0 %v1516
        %1550 = vmatprep.subr.mxu0 0.0
        %1551 = vmatpush2.xpose.msra.mxu0 0.0
        %1552 = vmatprep.subr.mxu0 0.0
        %1553 = vmatpush2.xpose.msra.mxu0 0.0
        %1554 = vmatprep.subr.mxu0 0.0
        %1555 = vmatpush2.xpose.msra.mxu0 0.0
        %1556 = vmatprep.subr.mxu0 0.0
        %1557 = vmatpush2.xpose.msra.mxu0 0.0
        %1558 = vmatprep.subr.mxu0 0.0
        %1559 = vmatpush2.xpose.msra.mxu0 0.0
        %1560 = vmatprep.subr.mxu0 0.0
        %1561 = vmatpush2.xpose.msra.mxu0 0.0
        %1562 = vmatprep.subr.mxu0 0.0
        %1563 = vmatpush2.xpose.msra.mxu0 0.0
        %1564 = vmatprep.subr.mxu0 0.0
        %1565 = vmatpush2.xpose.msra.mxu0 0.0
        %1566 = vmatprep.subr.mxu0 0.0
        %1567 = vmatpush2.xpose.msra.mxu0 0.0
        %1568 = vmatprep.subr.mxu0 0.0
        %1569 = vmatpush2.xpose.msra.mxu0 0.0
        %1570 = vmatprep.subr.mxu0 0.0
        %1571 = vmatpush2.xpose.msra.mxu0 0.0
        %1572 = vmatprep.subr.mxu0 0.0
        %1573 = vmatpush2.xpose.msra.mxu0 0.0
        %1574 = vmatprep.subr.mxu0 0.0
        %1575 = vmatpush2.xpose.msra.mxu0 0.0
        %1576 = vmatprep.subr.mxu0 0.0
        %1577 = vmatpush2.xpose.msra.mxu0 0.0
        %1578 = vmatprep.subr.mxu0 0.0
        %1579 = vmatpush2.xpose.msra.mxu0 0.0
        %1580 = vmatprep.subr.mxu0 0.0
        %1581 = vmatpush2.xpose.msra.mxu0 0.0
        %1582 = vmatprep.mubr.f32.mxu0 0.0
        %1583 = vmatmul.mubr.f32.gmra.mxu0 %v1513
        %v1584 = vpop.f32.mrf.mxu0
        %v1585 = vadd.f32 0.0, %v1584
        %v1586 = vpop.f32.mrf.mxu0
        %1587 = vdwg.mxu0
        %v1589 = vsel %vm1207, %v612, 0
        %v1592 = vsel %vm1207, %v908, 0
        %1594 = vmatprep.subr.mxu0 0.0
        %1595 = vmatpush1.xpose.msra.mxu0 0.0
        %1596 = vmatprep.subr.mxu0 0.0
        %1597 = vmatpush1.xpose.msra.mxu0 0.0
        %1598 = vmatprep.subr.mxu0 0.0
        %1599 = vmatpush1.xpose.msra.mxu0 0.0
        %1600 = vmatprep.subr.mxu0 0.0
        %1601 = vmatpush1.xpose.msra.mxu0 0.0
        %1602 = vmatprep.subr.mxu0 0.0
        %1603 = vmatpush1.xpose.msra.mxu0 0.0
        %1604 = vmatprep.subr.mxu0 0.0
        %1605 = vmatpush1.xpose.msra.mxu0 0.0
        %1606 = vmatprep.subr.mxu0 0.0
        %1607 = vmatpush1.xpose.msra.mxu0 0.0
        %1608 = vmatprep.subr.mxu0 0.0
        %1609 = vmatpush1.xpose.msra.mxu0 0.0
        %1610 = vmatprep.subr.mxu0 0.0
        %1611 = vmatpush1.xpose.msra.mxu0 0.0
        %1612 = vmatprep.subr.mxu0 0.0
        %1613 = vmatpush1.xpose.msra.mxu0 0.0
        %1614 = vmatprep.subr.mxu0 0.0
        %1615 = vmatpush1.xpose.msra.mxu0 0.0
        %1616 = vmatprep.subr.mxu0 0.0
        %1617 = vmatpush1.xpose.msra.mxu0 0.0
        %1618 = vmatprep.subr.mxu0 0.0
        %1619 = vmatpush1.xpose.msra.mxu0 0.0
        %1620 = vmatprep.subr.mxu0 0.0
        %1621 = vmatpush1.xpose.msra.mxu0 0.0
        %1622 = vmatprep.subr.mxu0 0.0
        %1623 = vmatpush1.xpose.msra.mxu0 0.0
        %1624 = vmatprep.subr.mxu0 0.0
        %1625 = vmatpush1.xpose.msra.mxu0 %v1592
        %1626 = vmatprep.subr.mxu0 0.0
        %1627 = vmatpush2.xpose.msra.mxu0 0.0
        %1628 = vmatprep.subr.mxu0 0.0
        %1629 = vmatpush2.xpose.msra.mxu0 0.0
        %1630 = vmatprep.subr.mxu0 0.0
        %1631 = vmatpush2.xpose.msra.mxu0 0.0
        %1632 = vmatprep.subr.mxu0 0.0
        %1633 = vmatpush2.xpose.msra.mxu0 0.0
        %1634 = vmatprep.subr.mxu0 0.0
        %1635 = vmatpush2.xpose.msra.mxu0 0.0
        %1636 = vmatprep.subr.mxu0 0.0
        %1637 = vmatpush2.xpose.msra.mxu0 0.0
        %1638 = vmatprep.subr.mxu0 0.0
        %1639 = vmatpush2.xpose.msra.mxu0 0.0
        %1640 = vmatprep.subr.mxu0 0.0
        %1641 = vmatpush2.xpose.msra.mxu0 0.0
        %1642 = vmatprep.subr.mxu0 0.0
        %1643 = vmatpush2.xpose.msra.mxu0 0.0
        %1644 = vmatprep.subr.mxu0 0.0
        %1645 = vmatpush2.xpose.msra.mxu0 0.0
        %1646 = vmatprep.subr.mxu0 0.0
        %1647 = vmatpush2.xpose.msra.mxu0 0.0
        %1648 = vmatprep.subr.mxu0 0.0
        %1649 = vmatpush2.xpose.msra.mxu0 0.0
        %1650 = vmatprep.subr.mxu0 0.0
        %1651 = vmatpush2.xpose.msra.mxu0 0.0
        %1652 = vmatprep.subr.mxu0 0.0
        %1653 = vmatpush2.xpose.msra.mxu0 0.0
        %1654 = vmatprep.subr.mxu0 0.0
        %1655 = vmatpush2.xpose.msra.mxu0 0.0
        %1656 = vmatprep.subr.mxu0 0.0
        %1657 = vmatpush2.xpose.msra.mxu0 0.0
        %1658 = vmatprep.mubr.f32.mxu0 0.0
        %1659 = vmatmul.mubr.f32.gmra.mxu0 %v1589
        %v1660 = vpop.f32.mrf.mxu0
        %v1661 = vadd.f32 0.0, %v1660
        %v1662 = vpop.f32.mrf.mxu0
        %1663 = vdwg.mxu0
        %v1665 = vsel %vm1207, %v613, 0
        %v1668 = vsel %vm1207, %v909, 0
        %1670 = vmatprep.subr.mxu0 0.0
        %1671 = vmatpush1.xpose.msra.mxu0 0.0
        %1672 = vmatprep.subr.mxu0 0.0
        %1673 = vmatpush1.xpose.msra.mxu0 0.0
        %1674 = vmatprep.subr.mxu0 0.0
        %1675 = vmatpush1.xpose.msra.mxu0 0.0
        %1676 = vmatprep.subr.mxu0 0.0
        %1677 = vmatpush1.xpose.msra.mxu0 0.0
        %1678 = vmatprep.subr.mxu0 0.0
        %1679 = vmatpush1.xpose.msra.mxu0 0.0
        %1680 = vmatprep.subr.mxu0 0.0
        %1681 = vmatpush1.xpose.msra.mxu0 0.0
        %1682 = vmatprep.subr.mxu0 0.0
        %1683 = vmatpush1.xpose.msra.mxu0 0.0
        %1684 = vmatprep.subr.mxu0 0.0
        %1685 = vmatpush1.xpose.msra.mxu0 0.0
        %1686 = vmatprep.subr.mxu0 0.0
        %1687 = vmatpush1.xpose.msra.mxu0 0.0
        %1688 = vmatprep.subr.mxu0 0.0
        %1689 = vmatpush1.xpose.msra.mxu0 0.0
        %1690 = vmatprep.subr.mxu0 0.0
        %1691 = vmatpush1.xpose.msra.mxu0 0.0
        %1692 = vmatprep.subr.mxu0 0.0
        %1693 = vmatpush1.xpose.msra.mxu0 0.0
        %1694 = vmatprep.subr.mxu0 0.0
        %1695 = vmatpush1.xpose.msra.mxu0 0.0
        %1696 = vmatprep.subr.mxu0 0.0
        %1697 = vmatpush1.xpose.msra.mxu0 0.0
        %1698 = vmatprep.subr.mxu0 0.0
        %1699 = vmatpush1.xpose.msra.mxu0 0.0
        %1700 = vmatprep.subr.mxu0 0.0
        %1701 = vmatpush1.xpose.msra.mxu0 %v1668
        %1702 = vmatprep.subr.mxu0 0.0
        %1703 = vmatpush2.xpose.msra.mxu0 0.0
        %1704 = vmatprep.subr.mxu0 0.0
        %1705 = vmatpush2.xpose.msra.mxu0 0.0
        %1706 = vmatprep.subr.mxu0 0.0
        %1707 = vmatpush2.xpose.msra.mxu0 0.0
        %1708 = vmatprep.subr.mxu0 0.0
        %1709 = vmatpush2.xpose.msra.mxu0 0.0
        %1710 = vmatprep.subr.mxu0 0.0
        %1711 = vmatpush2.xpose.msra.mxu0 0.0
        %1712 = vmatprep.subr.mxu0 0.0
        %1713 = vmatpush2.xpose.msra.mxu0 0.0
        %1714 = vmatprep.subr.mxu0 0.0
        %1715 = vmatpush2.xpose.msra.mxu0 0.0
        %1716 = vmatprep.subr.mxu0 0.0
        %1717 = vmatpush2.xpose.msra.mxu0 0.0
        %1718 = vmatprep.subr.mxu0 0.0
        %1719 = vmatpush2.xpose.msra.mxu0 0.0
        %1720 = vmatprep.subr.mxu0 0.0
        %1721 = vmatpush2.xpose.msra.mxu0 0.0
        %1722 = vmatprep.subr.mxu0 0.0
        %1723 = vmatpush2.xpose.msra.mxu0 0.0
        %1724 = vmatprep.subr.mxu0 0.0
        %1725 = vmatpush2.xpose.msra.mxu0 0.0
        %1726 = vmatprep.subr.mxu0 0.0
        %1727 = vmatpush2.xpose.msra.mxu0 0.0
        %1728 = vmatprep.subr.mxu0 0.0
        %1729 = vmatpush2.xpose.msra.mxu0 0.0
        %1730 = vmatprep.subr.mxu0 0.0
        %1731 = vmatpush2.xpose.msra.mxu0 0.0
        %1732 = vmatprep.subr.mxu0 0.0
        %1733 = vmatpush2.xpose.msra.mxu0 0.0
        %1734 = vmatprep.mubr.f32.mxu0 0.0
        %1735 = vmatmul.mubr.f32.gmra.mxu0 %v1665
        %v1736 = vpop.f32.mrf.mxu0
        %v1737 = vadd.f32 0.0, %v1736
        %v1738 = vpop.f32.mrf.mxu0
        %1739 = vdwg.mxu0
        %v1741 = vsel %vm1207, %v614, 0
        %v1744 = vsel %vm1207, %v910, 0
        %1746 = vmatprep.subr.mxu0 0.0
        %1747 = vmatpush1.xpose.msra.mxu0 0.0
        %1748 = vmatprep.subr.mxu0 0.0
        %1749 = vmatpush1.xpose.msra.mxu0 0.0
        %1750 = vmatprep.subr.mxu0 0.0
        %1751 = vmatpush1.xpose.msra.mxu0 0.0
        %1752 = vmatprep.subr.mxu0 0.0
        %1753 = vmatpush1.xpose.msra.mxu0 0.0
        %1754 = vmatprep.subr.mxu0 0.0
        %1755 = vmatpush1.xpose.msra.mxu0 0.0
        %1756 = vmatprep.subr.mxu0 0.0
        %1757 = vmatpush1.xpose.msra.mxu0 0.0
        %1758 = vmatprep.subr.mxu0 0.0
        %1759 = vmatpush1.xpose.msra.mxu0 0.0
        %1760 = vmatprep.subr.mxu0 0.0
        %1761 = vmatpush1.xpose.msra.mxu0 0.0
        %1762 = vmatprep.subr.mxu0 0.0
        %1763 = vmatpush1.xpose.msra.mxu0 0.0
        %1764 = vmatprep.subr.mxu0 0.0
        %1765 = vmatpush1.xpose.msra.mxu0 0.0
        %1766 = vmatprep.subr.mxu0 0.0
        %1767 = vmatpush1.xpose.msra.mxu0 0.0
        %1768 = vmatprep.subr.mxu0 0.0
        %1769 = vmatpush1.xpose.msra.mxu0 0.0
        %1770 = vmatprep.subr.mxu0 0.0
        %1771 = vmatpush1.xpose.msra.mxu0 0.0
        %1772 = vmatprep.subr.mxu0 0.0
        %1773 = vmatpush1.xpose.msra.mxu0 0.0
        %1774 = vmatprep.subr.mxu0 0.0
        %1775 = vmatpush1.xpose.msra.mxu0 0.0
        %1776 = vmatprep.subr.mxu0 0.0
        %1777 = vmatpush1.xpose.msra.mxu0 %v1744
        %1778 = vmatprep.subr.mxu0 0.0
        %1779 = vmatpush2.xpose.msra.mxu0 0.0
        %1780 = vmatprep.subr.mxu0 0.0
        %1781 = vmatpush2.xpose.msra.mxu0 0.0
        %1782 = vmatprep.subr.mxu0 0.0
        %1783 = vmatpush2.xpose.msra.mxu0 0.0
        %1784 = vmatprep.subr.mxu0 0.0
        %1785 = vmatpush2.xpose.msra.mxu0 0.0
        %1786 = vmatprep.subr.mxu0 0.0
        %1787 = vmatpush2.xpose.msra.mxu0 0.0
        %1788 = vmatprep.subr.mxu0 0.0
        %1789 = vmatpush2.xpose.msra.mxu0 0.0
        %1790 = vmatprep.subr.mxu0 0.0
        %1791 = vmatpush2.xpose.msra.mxu0 0.0
        %1792 = vmatprep.subr.mxu0 0.0
        %1793 = vmatpush2.xpose.msra.mxu0 0.0
        %1794 = vmatprep.subr.mxu0 0.0
        %1795 = vmatpush2.xpose.msra.mxu0 0.0
        %1796 = vmatprep.subr.mxu0 0.0
        %1797 = vmatpush2.xpose.msra.mxu0 0.0
        %1798 = vmatprep.subr.mxu0 0.0
        %1799 = vmatpush2.xpose.msra.mxu0 0.0
        %1800 = vmatprep.subr.mxu0 0.0
        %1801 = vmatpush2.xpose.msra.mxu0 0.0
        %1802 = vmatprep.subr.mxu0 0.0
        %1803 = vmatpush2.xpose.msra.mxu0 0.0
        %1804 = vmatprep.subr.mxu0 0.0
        %1805 = vmatpush2.xpose.msra.mxu0 0.0
        %1806 = vmatprep.subr.mxu0 0.0
        %1807 = vmatpush2.xpose.msra.mxu0 0.0
        %1808 = vmatprep.subr.mxu0 0.0
        %1809 = vmatpush2.xpose.msra.mxu0 0.0
        %1810 = vmatprep.mubr.f32.mxu0 0.0
        %1811 = vmatmul.mubr.f32.gmra.mxu0 %v1741
        %v1812 = vpop.f32.mrf.mxu0
        %v1813 = vadd.f32 0.0, %v1812
        %v1814 = vpop.f32.mrf.mxu0
        %1815 = vdwg.mxu0
        %vm1816 = vcmask 64512
        %v1817 = vsel %vm1816, %v1281, -inf
        %1818 = vmax.xlane.f32.xlu0 %v1817
        %v1819 = vpop.xlane.xlu0 %1818
        %v1820 = vsel %vm1816, %v1357, -inf
        %1821 = vmax.xlane.f32.xlu0 %v1820
        %v1822 = vpop.xlane.xlu0 %1821
        %v1823 = vsel %vm1816, %v1433, -inf
        %1824 = vmax.xlane.f32.xlu0 %v1823
        %v1825 = vpop.xlane.xlu0 %1824
        %v1826 = vsel %vm1816, %v1509, -inf
        %1827 = vmax.xlane.f32.xlu0 %v1826
        %v1828 = vpop.xlane.xlu0 %1827
        %v1829 = vsel %vm1816, %v1585, -inf
        %1830 = vmax.xlane.f32.xlu0 %v1829
        %v1831 = vpop.xlane.xlu0 %1830
        %v1832 = vsel %vm1816, %v1661, -inf
        %1833 = vmax.xlane.f32.xlu0 %v1832
        %v1834 = vpop.xlane.xlu0 %1833
        %v1835 = vsel %vm1816, %v1737, -inf
        %1836 = vmax.xlane.f32.xlu0 %v1835
        %v1837 = vpop.xlane.xlu0 %1836
        %v1838 = vsel %vm1816, %v1813, -inf
        %1839 = vmax.xlane.f32.xlu0 %v1838
        %v1840 = vpop.xlane.xlu0 %1839
        %v1841 = vsub.f32 %v1281, %v1819
        %v1842 = vsub.f32 %v1357, %v1822
        %v1843 = vsub.f32 %v1433, %v1825
        %v1844 = vsub.f32 %v1509, %v1828
        %v1845 = vsub.f32 %v1585, %v1831
        %v1846 = vsub.f32 %v1661, %v1834
        %v1847 = vsub.f32 %v1737, %v1837
        %v1848 = vsub.f32 %v1813, %v1840
        %v1849 = vmul.f32 %v1841, 1.442695
        %v1850 = vpow.pop %v1849
        %v1851 = vmul.f32 %v1842, 1.442695
        %v1852 = vpow.pop %v1851
        %v1853 = vmul.f32 %v1843, 1.442695
        %v1854 = vpow.pop %v1853
        %v1855 = vmul.f32 %v1844, 1.442695
        %v1856 = vpow.pop %v1855
        %v1857 = vmul.f32 %v1845, 1.442695
        %v1858 = vpow.pop %v1857
        %v1859 = vmul.f32 %v1846, 1.442695
        %v1860 = vpow.pop %v1859
        %v1861 = vmul.f32 %v1847, 1.442695
        %v1862 = vpow.pop %v1861
        %v1863 = vmul.f32 %v1848, 1.442695
        %v1864 = vpow.pop %v1863
        %v1865 = vsel %vm1816, %v1850, 0.0
        %1866 = vadd.xlane.f32.xlu0 %v1865
        %v1867 = vpop.xlane.xlu0 %1866
        %v1868 = vsel %vm1816, %v1852, 0.0
        %1869 = vadd.xlane.f32.xlu0 %v1868
        %v1870 = vpop.xlane.xlu0 %1869
        %v1871 = vsel %vm1816, %v1854, 0.0
        %1872 = vadd.xlane.f32.xlu0 %v1871
        %v1873 = vpop.xlane.xlu0 %1872
        %v1874 = vsel %vm1816, %v1856, 0.0
        %1875 = vadd.xlane.f32.xlu0 %v1874
        %v1876 = vpop.xlane.xlu0 %1875
        %v1877 = vsel %vm1816, %v1858, 0.0
        %1878 = vadd.xlane.f32.xlu0 %v1877
        %v1879 = vpop.xlane.xlu0 %1878
        %v1880 = vsel %vm1816, %v1860, 0.0
        %1881 = vadd.xlane.f32.xlu0 %v1880
        %v1882 = vpop.xlane.xlu0 %1881
        %v1883 = vsel %vm1816, %v1862, 0.0
        %1884 = vadd.xlane.f32.xlu0 %v1883
        %v1885 = vpop.xlane.xlu0 %1884
        %v1886 = vsel %vm1816, %v1864, 0.0
        %1887 = vadd.xlane.f32.xlu0 %v1886
        %v1888 = vpop.xlane.xlu0 %1887
        %v1890 = vsel %vm1816, %v1850, 0
        %1892 = vmatprep.subr.mxu0 0.0
        %1893 = vmatpush1.msra.mxu0 0.0
        %1894 = vmatprep.subr.mxu0 0.0
        %1895 = vmatpush1.msra.mxu0 0.0
        %1896 = vmatprep.subr.mxu0 0.0
        %1897 = vmatpush1.msra.mxu0 0.0
        %1898 = vmatprep.subr.mxu0 0.0
        %1899 = vmatpush1.msra.mxu0 0.0
        %1900 = vmatprep.subr.mxu0 0.0
        %1901 = vmatpush1.msra.mxu0 0.0
        %1902 = vmatprep.subr.mxu0 0.0
        %1903 = vmatpush1.msra.mxu0 0.0
        %1904 = vmatprep.subr.mxu0 0.0
        %1905 = vmatpush1.msra.mxu0 0.0
        %1906 = vmatprep.subr.mxu0 0.0
        %1907 = vmatpush1.msra.mxu0 0.0
        %1908 = vmatprep.subr.mxu0 0.0
        %1909 = vmatpush1.msra.mxu0 0.0
        %1910 = vmatprep.subr.mxu0 0.0
        %1911 = vmatpush1.msra.mxu0 0.0
        %1912 = vmatprep.subr.mxu0 0.0
        %1913 = vmatpush1.msra.mxu0 0.0
        %1914 = vmatprep.subr.mxu0 0.0
        %1915 = vmatpush1.msra.mxu0 0.0
        %1916 = vmatprep.subr.mxu0 0.0
        %1917 = vmatpush1.msra.mxu0 0.0
        %1918 = vmatprep.subr.mxu0 0.0
        %1919 = vmatpush1.msra.mxu0 0.0
        %1920 = vmatprep.subr.mxu0 0.0
        %1921 = vmatpush1.msra.mxu0 0.0
        %1922 = vmatprep.subr.mxu0 0.0
        %1923 = vmatpush1.msra.mxu0 %v1199
        %1924 = vmatprep.subr.mxu0 0.0
        %1925 = vmatpush2.msra.mxu0 0.0
        %1926 = vmatprep.subr.mxu0 0.0
        %1927 = vmatpush2.msra.mxu0 0.0
        %1928 = vmatprep.subr.mxu0 0.0
        %1929 = vmatpush2.msra.mxu0 0.0
        %1930 = vmatprep.subr.mxu0 0.0
        %1931 = vmatpush2.msra.mxu0 0.0
        %1932 = vmatprep.subr.mxu0 0.0
        %1933 = vmatpush2.msra.mxu0 0.0
        %1934 = vmatprep.subr.mxu0 0.0
        %1935 = vmatpush2.msra.mxu0 0.0
        %1936 = vmatprep.subr.mxu0 0.0
        %1937 = vmatpush2.msra.mxu0 0.0
        %1938 = vmatprep.subr.mxu0 0.0
        %1939 = vmatpush2.msra.mxu0 0.0
        %1940 = vmatprep.subr.mxu0 0.0
        %1941 = vmatpush2.msra.mxu0 0.0
        %1942 = vmatprep.subr.mxu0 0.0
        %1943 = vmatpush2.msra.mxu0 0.0
        %1944 = vmatprep.subr.mxu0 0.0
        %1945 = vmatpush2.msra.mxu0 0.0
        %1946 = vmatprep.subr.mxu0 0.0
        %1947 = vmatpush2.msra.mxu0 0.0
        %1948 = vmatprep.subr.mxu0 0.0
        %1949 = vmatpush2.msra.mxu0 0.0
        %1950 = vmatprep.subr.mxu0 0.0
        %1951 = vmatpush2.msra.mxu0 0.0
        %1952 = vmatprep.subr.mxu0 0.0
        %1953 = vmatpush2.msra.mxu0 0.0
        %1954 = vmatprep.subr.mxu0 0.0
        %1955 = vmatpush2.msra.mxu0 0.0
        %1956 = vmatprep.mubr.f32.mxu0 0.0
        %1957 = vmatmul.mubr.f32.gmra.mxu0 %v1890
        %v1958 = vpop.f32.mrf.mxu0
        %v1959 = vadd.f32 0.0, %v1958
        %v1960 = vpop.f32.mrf.mxu0
        %1961 = vdwg.mxu0
        %v1963 = vsel %vm1816, %v1852, 0
        %1965 = vmatprep.subr.mxu0 0.0
        %1966 = vmatpush1.msra.mxu0 0.0
        %1967 = vmatprep.subr.mxu0 0.0
        %1968 = vmatpush1.msra.mxu0 0.0
        %1969 = vmatprep.subr.mxu0 0.0
        %1970 = vmatpush1.msra.mxu0 0.0
        %1971 = vmatprep.subr.mxu0 0.0
        %1972 = vmatpush1.msra.mxu0 0.0
        %1973 = vmatprep.subr.mxu0 0.0
        %1974 = vmatpush1.msra.mxu0 0.0
        %1975 = vmatprep.subr.mxu0 0.0
        %1976 = vmatpush1.msra.mxu0 0.0
        %1977 = vmatprep.subr.mxu0 0.0
        %1978 = vmatpush1.msra.mxu0 0.0
        %1979 = vmatprep.subr.mxu0 0.0
        %1980 = vmatpush1.msra.mxu0 0.0
        %1981 = vmatprep.subr.mxu0 0.0
        %1982 = vmatpush1.msra.mxu0 0.0
        %1983 = vmatprep.subr.mxu0 0.0
        %1984 = vmatpush1.msra.mxu0 0.0
        %1985 = vmatprep.subr.mxu0 0.0
        %1986 = vmatpush1.msra.mxu0 0.0
        %1987 = vmatprep.subr.mxu0 0.0
        %1988 = vmatpush1.msra.mxu0 0.0
        %1989 = vmatprep.subr.mxu0 0.0
        %1990 = vmatpush1.msra.mxu0 0.0
        %1991 = vmatprep.subr.mxu0 0.0
        %1992 = vmatpush1.msra.mxu0 0.0
        %1993 = vmatprep.subr.mxu0 0.0
        %1994 = vmatpush1.msra.mxu0 0.0
        %1995 = vmatprep.subr.mxu0 0.0
        %1996 = vmatpush1.msra.mxu0 %v1200
        %1997 = vmatprep.subr.mxu0 0.0
        %1998 = vmatpush2.msra.mxu0 0.0
        %1999 = vmatprep.subr.mxu0 0.0
        %2000 = vmatpush2.msra.mxu0 0.0
        %2001 = vmatprep.subr.mxu0 0.0
        %2002 = vmatpush2.msra.mxu0 0.0
        %2003 = vmatprep.subr.mxu0 0.0
        %2004 = vmatpush2.msra.mxu0 0.0
        %2005 = vmatprep.subr.mxu0 0.0
        %2006 = vmatpush2.msra.mxu0 0.0
        %2007 = vmatprep.subr.mxu0 0.0
        %2008 = vmatpush2.msra.mxu0 0.0
        %2009 = vmatprep.subr.mxu0 0.0
        %2010 = vmatpush2.msra.mxu0 0.0
        %2011 = vmatprep.subr.mxu0 0.0
        %2012 = vmatpush2.msra.mxu0 0.0
        %2013 = vmatprep.subr.mxu0 0.0
        %2014 = vmatpush2.msra.mxu0 0.0
        %2015 = vmatprep.subr.mxu0 0.0
        %2016 = vmatpush2.msra.mxu0 0.0
        %2017 = vmatprep.subr.mxu0 0.0
        %2018 = vmatpush2.msra.mxu0 0.0
        %2019 = vmatprep.subr.mxu0 0.0
        %2020 = vmatpush2.msra.mxu0 0.0
        %2021 = vmatprep.subr.mxu0 0.0
        %2022 = vmatpush2.msra.mxu0 0.0
        %2023 = vmatprep.subr.mxu0 0.0
        %2024 = vmatpush2.msra.mxu0 0.0
        %2025 = vmatprep.subr.mxu0 0.0
        %2026 = vmatpush2.msra.mxu0 0.0
        %2027 = vmatprep.subr.mxu0 0.0
        %2028 = vmatpush2.msra.mxu0 0.0
        %2029 = vmatprep.mubr.f32.mxu0 0.0
        %2030 = vmatmul.mubr.f32.gmra.mxu0 %v1963
        %v2031 = vpop.f32.mrf.mxu0
        %v2032 = vadd.f32 0.0, %v2031
        %v2033 = vpop.f32.mrf.mxu0
        %2034 = vdwg.mxu0
        %v2036 = vsel %vm1816, %v1854, 0
        %2038 = vmatprep.subr.mxu0 0.0
        %2039 = vmatpush1.msra.mxu0 0.0
        %2040 = vmatprep.subr.mxu0 0.0
        %2041 = vmatpush1.msra.mxu0 0.0
        %2042 = vmatprep.subr.mxu0 0.0
        %2043 = vmatpush1.msra.mxu0 0.0
        %2044 = vmatprep.subr.mxu0 0.0
        %2045 = vmatpush1.msra.mxu0 0.0
        %2046 = vmatprep.subr.mxu0 0.0
        %2047 = vmatpush1.msra.mxu0 0.0
        %2048 = vmatprep.subr.mxu0 0.0
        %2049 = vmatpush1.msra.mxu0 0.0
        %2050 = vmatprep.subr.mxu0 0.0
        %2051 = vmatpush1.msra.mxu0 0.0
        %2052 = vmatprep.subr.mxu0 0.0
        %2053 = vmatpush1.msra.mxu0 0.0
        %2054 = vmatprep.subr.mxu0 0.0
        %2055 = vmatpush1.msra.mxu0 0.0
        %2056 = vmatprep.subr.mxu0 0.0
        %2057 = vmatpush1.msra.mxu0 0.0
        %2058 = vmatprep.subr.mxu0 0.0
        %2059 = vmatpush1.msra.mxu0 0.0
        %2060 = vmatprep.subr.mxu0 0.0
        %2061 = vmatpush1.msra.mxu0 0.0
        %2062 = vmatprep.subr.mxu0 0.0
        %2063 = vmatpush1.msra.mxu0 0.0
        %2064 = vmatprep.subr.mxu0 0.0
        %2065 = vmatpush1.msra.mxu0 0.0
        %2066 = vmatprep.subr.mxu0 0.0
        %2067 = vmatpush1.msra.mxu0 0.0
        %2068 = vmatprep.subr.mxu0 0.0
        %2069 = vmatpush1.msra.mxu0 %v1201
        %2070 = vmatprep.subr.mxu0 0.0
        %2071 = vmatpush2.msra.mxu0 0.0
        %2072 = vmatprep.subr.mxu0 0.0
        %2073 = vmatpush2.msra.mxu0 0.0
        %2074 = vmatprep.subr.mxu0 0.0
        %2075 = vmatpush2.msra.mxu0 0.0
        %2076 = vmatprep.subr.mxu0 0.0
        %2077 = vmatpush2.msra.mxu0 0.0
        %2078 = vmatprep.subr.mxu0 0.0
        %2079 = vmatpush2.msra.mxu0 0.0
        %2080 = vmatprep.subr.mxu0 0.0
        %2081 = vmatpush2.msra.mxu0 0.0
        %2082 = vmatprep.subr.mxu0 0.0
        %2083 = vmatpush2.msra.mxu0 0.0
        %2084 = vmatprep.subr.mxu0 0.0
        %2085 = vmatpush2.msra.mxu0 0.0
        %2086 = vmatprep.subr.mxu0 0.0
        %2087 = vmatpush2.msra.mxu0 0.0
        %2088 = vmatprep.subr.mxu0 0.0
        %2089 = vmatpush2.msra.mxu0 0.0
        %2090 = vmatprep.subr.mxu0 0.0
        %2091 = vmatpush2.msra.mxu0 0.0
        %2092 = vmatprep.subr.mxu0 0.0
        %2093 = vmatpush2.msra.mxu0 0.0
        %2094 = vmatprep.subr.mxu0 0.0
        %2095 = vmatpush2.msra.mxu0 0.0
        %2096 = vmatprep.subr.mxu0 0.0
        %2097 = vmatpush2.msra.mxu0 0.0
        %2098 = vmatprep.subr.mxu0 0.0
        %2099 = vmatpush2.msra.mxu0 0.0
        %2100 = vmatprep.subr.mxu0 0.0
        %2101 = vmatpush2.msra.mxu0 0.0
        %2102 = vmatprep.mubr.f32.mxu0 0.0
        %2103 = vmatmul.mubr.f32.gmra.mxu0 %v2036
        %v2104 = vpop.f32.mrf.mxu0
        %v2105 = vadd.f32 0.0, %v2104
        %v2106 = vpop.f32.mrf.mxu0
        %2107 = vdwg.mxu0
        %v2109 = vsel %vm1816, %v1856, 0
        %2111 = vmatprep.subr.mxu0 0.0
        %2112 = vmatpush1.msra.mxu0 0.0
        %2113 = vmatprep.subr.mxu0 0.0
        %2114 = vmatpush1.msra.mxu0 0.0
        %2115 = vmatprep.subr.mxu0 0.0
        %2116 = vmatpush1.msra.mxu0 0.0
        %2117 = vmatprep.subr.mxu0 0.0
        %2118 = vmatpush1.msra.mxu0 0.0
        %2119 = vmatprep.subr.mxu0 0.0
        %2120 = vmatpush1.msra.mxu0 0.0
        %2121 = vmatprep.subr.mxu0 0.0
        %2122 = vmatpush1.msra.mxu0 0.0
        %2123 = vmatprep.subr.mxu0 0.0
        %2124 = vmatpush1.msra.mxu0 0.0
        %2125 = vmatprep.subr.mxu0 0.0
        %2126 = vmatpush1.msra.mxu0 0.0
        %2127 = vmatprep.subr.mxu0 0.0
        %2128 = vmatpush1.msra.mxu0 0.0
        %2129 = vmatprep.subr.mxu0 0.0
        %2130 = vmatpush1.msra.mxu0 0.0
        %2131 = vmatprep.subr.mxu0 0.0
        %2132 = vmatpush1.msra.mxu0 0.0
        %2133 = vmatprep.subr.mxu0 0.0
        %2134 = vmatpush1.msra.mxu0 0.0
        %2135 = vmatprep.subr.mxu0 0.0
        %2136 = vmatpush1.msra.mxu0 0.0
        %2137 = vmatprep.subr.mxu0 0.0
        %2138 = vmatpush1.msra.mxu0 0.0
        %2139 = vmatprep.subr.mxu0 0.0
        %2140 = vmatpush1.msra.mxu0 0.0
        %2141 = vmatprep.subr.mxu0 0.0
        %2142 = vmatpush1.msra.mxu0 %v1202
        %2143 = vmatprep.subr.mxu0 0.0
        %2144 = vmatpush2.msra.mxu0 0.0
        %2145 = vmatprep.subr.mxu0 0.0
        %2146 = vmatpush2.msra.mxu0 0.0
        %2147 = vmatprep.subr.mxu0 0.0
        %2148 = vmatpush2.msra.mxu0 0.0
        %2149 = vmatprep.subr.mxu0 0.0
        %2150 = vmatpush2.msra.mxu0 0.0
        %2151 = vmatprep.subr.mxu0 0.0
        %2152 = vmatpush2.msra.mxu0 0.0
        %2153 = vmatprep.subr.mxu0 0.0
        %2154 = vmatpush2.msra.mxu0 0.0
        %2155 = vmatprep.subr.mxu0 0.0
        %2156 = vmatpush2.msra.mxu0 0.0
        %2157 = vmatprep.subr.mxu0 0.0
        %2158 = vmatpush2.msra.mxu0 0.0
        %2159 = vmatprep.subr.mxu0 0.0
        %2160 = vmatpush2.msra.mxu0 0.0
        %2161 = vmatprep.subr.mxu0 0.0
        %2162 = vmatpush2.msra.mxu0 0.0
        %2163 = vmatprep.subr.mxu0 0.0
        %2164 = vmatpush2.msra.mxu0 0.0
        %2165 = vmatprep.subr.mxu0 0.0
        %2166 = vmatpush2.msra.mxu0 0.0
        %2167 = vmatprep.subr.mxu0 0.0
        %2168 = vmatpush2.msra.mxu0 0.0
        %2169 = vmatprep.subr.mxu0 0.0
        %2170 = vmatpush2.msra.mxu0 0.0
        %2171 = vmatprep.subr.mxu0 0.0
        %2172 = vmatpush2.msra.mxu0 0.0
        %2173 = vmatprep.subr.mxu0 0.0
        %2174 = vmatpush2.msra.mxu0 0.0
        %2175 = vmatprep.mubr.f32.mxu0 0.0
        %2176 = vmatmul.mubr.f32.gmra.mxu0 %v2109
        %v2177 = vpop.f32.mrf.mxu0
        %v2178 = vadd.f32 0.0, %v2177
        %v2179 = vpop.f32.mrf.mxu0
        %2180 = vdwg.mxu0
        %v2182 = vsel %vm1816, %v1858, 0
        %2184 = vmatprep.subr.mxu0 0.0
        %2185 = vmatpush1.msra.mxu0 0.0
        %2186 = vmatprep.subr.mxu0 0.0
        %2187 = vmatpush1.msra.mxu0 0.0
        %2188 = vmatprep.subr.mxu0 0.0
        %2189 = vmatpush1.msra.mxu0 0.0
        %2190 = vmatprep.subr.mxu0 0.0
        %2191 = vmatpush1.msra.mxu0 0.0
        %2192 = vmatprep.subr.mxu0 0.0
        %2193 = vmatpush1.msra.mxu0 0.0
        %2194 = vmatprep.subr.mxu0 0.0
        %2195 = vmatpush1.msra.mxu0 0.0
        %2196 = vmatprep.subr.mxu0 0.0
        %2197 = vmatpush1.msra.mxu0 0.0
        %2198 = vmatprep.subr.mxu0 0.0
        %2199 = vmatpush1.msra.mxu0 0.0
        %2200 = vmatprep.subr.mxu0 0.0
        %2201 = vmatpush1.msra.mxu0 0.0
        %2202 = vmatprep.subr.mxu0 0.0
        %2203 = vmatpush1.msra.mxu0 0.0
        %2204 = vmatprep.subr.mxu0 0.0
        %2205 = vmatpush1.msra.mxu0 0.0
        %2206 = vmatprep.subr.mxu0 0.0
        %2207 = vmatpush1.msra.mxu0 0.0
        %2208 = vmatprep.subr.mxu0 0.0
        %2209 = vmatpush1.msra.mxu0 0.0
        %2210 = vmatprep.subr.mxu0 0.0
        %2211 = vmatpush1.msra.mxu0 0.0
        %2212 = vmatprep.subr.mxu0 0.0
        %2213 = vmatpush1.msra.mxu0 0.0
        %2214 = vmatprep.subr.mxu0 0.0
        %2215 = vmatpush1.msra.mxu0 %v1203
        %2216 = vmatprep.subr.mxu0 0.0
        %2217 = vmatpush2.msra.mxu0 0.0
        %2218 = vmatprep.subr.mxu0 0.0
        %2219 = vmatpush2.msra.mxu0 0.0
        %2220 = vmatprep.subr.mxu0 0.0
        %2221 = vmatpush2.msra.mxu0 0.0
        %2222 = vmatprep.subr.mxu0 0.0
        %2223 = vmatpush2.msra.mxu0 0.0
        %2224 = vmatprep.subr.mxu0 0.0
        %2225 = vmatpush2.msra.mxu0 0.0
        %2226 = vmatprep.subr.mxu0 0.0
        %2227 = vmatpush2.msra.mxu0 0.0
        %2228 = vmatprep.subr.mxu0 0.0
        %2229 = vmatpush2.msra.mxu0 0.0
        %2230 = vmatprep.subr.mxu0 0.0
        %2231 = vmatpush2.msra.mxu0 0.0
        %2232 = vmatprep.subr.mxu0 0.0
        %2233 = vmatpush2.msra.mxu0 0.0
        %2234 = vmatprep.subr.mxu0 0.0
        %2235 = vmatpush2.msra.mxu0 0.0
        %2236 = vmatprep.subr.mxu0 0.0
        %2237 = vmatpush2.msra.mxu0 0.0
        %2238 = vmatprep.subr.mxu0 0.0
        %2239 = vmatpush2.msra.mxu0 0.0
        %2240 = vmatprep.subr.mxu0 0.0
        %2241 = vmatpush2.msra.mxu0 0.0
        %2242 = vmatprep.subr.mxu0 0.0
        %2243 = vmatpush2.msra.mxu0 0.0
        %2244 = vmatprep.subr.mxu0 0.0
        %2245 = vmatpush2.msra.mxu0 0.0
        %2246 = vmatprep.subr.mxu0 0.0
        %2247 = vmatpush2.msra.mxu0 0.0
        %2248 = vmatprep.mubr.f32.mxu0 0.0
        %2249 = vmatmul.mubr.f32.gmra.mxu0 %v2182
        %v2250 = vpop.f32.mrf.mxu0
        %v2251 = vadd.f32 0.0, %v2250
        %v2252 = vpop.f32.mrf.mxu0
        %2253 = vdwg.mxu0
        %v2255 = vsel %vm1816, %v1860, 0
        %2257 = vmatprep.subr.mxu0 0.0
        %2258 = vmatpush1.msra.mxu0 0.0
        %2259 = vmatprep.subr.mxu0 0.0
        %2260 = vmatpush1.msra.mxu0 0.0
        %2261 = vmatprep.subr.mxu0 0.0
        %2262 = vmatpush1.msra.mxu0 0.0
        %2263 = vmatprep.subr.mxu0 0.0
        %2264 = vmatpush1.msra.mxu0 0.0
        %2265 = vmatprep.subr.mxu0 0.0
        %2266 = vmatpush1.msra.mxu0 0.0
        %2267 = vmatprep.subr.mxu0 0.0
        %2268 = vmatpush1.msra.mxu0 0.0
        %2269 = vmatprep.subr.mxu0 0.0
        %2270 = vmatpush1.msra.mxu0 0.0
        %2271 = vmatprep.subr.mxu0 0.0
        %2272 = vmatpush1.msra.mxu0 0.0
        %2273 = vmatprep.subr.mxu0 0.0
        %2274 = vmatpush1.msra.mxu0 0.0
        %2275 = vmatprep.subr.mxu0 0.0
        %2276 = vmatpush1.msra.mxu0 0.0
        %2277 = vmatprep.subr.mxu0 0.0
        %2278 = vmatpush1.msra.mxu0 0.0
        %2279 = vmatprep.subr.mxu0 0.0
        %2280 = vmatpush1.msra.mxu0 0.0
        %2281 = vmatprep.subr.mxu0 0.0
        %2282 = vmatpush1.msra.mxu0 0.0
        %2283 = vmatprep.subr.mxu0 0.0
        %2284 = vmatpush1.msra.mxu0 0.0
        %2285 = vmatprep.subr.mxu0 0.0
        %2286 = vmatpush1.msra.mxu0 0.0
        %2287 = vmatprep.subr.mxu0 0.0
        %2288 = vmatpush1.msra.mxu0 %v1204
        %2289 = vmatprep.subr.mxu0 0.0
        %2290 = vmatpush2.msra.mxu0 0.0
        %2291 = vmatprep.subr.mxu0 0.0
        %2292 = vmatpush2.msra.mxu0 0.0
        %2293 = vmatprep.subr.mxu0 0.0
        %2294 = vmatpush2.msra.mxu0 0.0
        %2295 = vmatprep.subr.mxu0 0.0
        %2296 = vmatpush2.msra.mxu0 0.0
        %2297 = vmatprep.subr.mxu0 0.0
        %2298 = vmatpush2.msra.mxu0 0.0
        %2299 = vmatprep.subr.mxu0 0.0
        %2300 = vmatpush2.msra.mxu0 0.0
        %2301 = vmatprep.subr.mxu0 0.0
        %2302 = vmatpush2.msra.mxu0 0.0
        %2303 = vmatprep.subr.mxu0 0.0
        %2304 = vmatpush2.msra.mxu0 0.0
        %2305 = vmatprep.subr.mxu0 0.0
        %2306 = vmatpush2.msra.mxu0 0.0
        %2307 = vmatprep.subr.mxu0 0.0
        %2308 = vmatpush2.msra.mxu0 0.0
        %2309 = vmatprep.subr.mxu0 0.0
        %2310 = vmatpush2.msra.mxu0 0.0
        %2311 = vmatprep.subr.mxu0 0.0
        %2312 = vmatpush2.msra.mxu0 0.0
        %2313 = vmatprep.subr.mxu0 0.0
        %2314 = vmatpush2.msra.mxu0 0.0
        %2315 = vmatprep.subr.mxu0 0.0
        %2316 = vmatpush2.msra.mxu0 0.0
        %2317 = vmatprep.subr.mxu0 0.0
        %2318 = vmatpush2.msra.mxu0 0.0
        %2319 = vmatprep.subr.mxu0 0.0
        %2320 = vmatpush2.msra.mxu0 0.0
        %2321 = vmatprep.mubr.f32.mxu0 0.0
        %2322 = vmatmul.mubr.f32.gmra.mxu0 %v2255
        %v2323 = vpop.f32.mrf.mxu0
        %v2324 = vadd.f32 0.0, %v2323
        %v2325 = vpop.f32.mrf.mxu0
        %2326 = vdwg.mxu0
        %v2328 = vsel %vm1816, %v1862, 0
        %2330 = vmatprep.subr.mxu0 0.0
        %2331 = vmatpush1.msra.mxu0 0.0
        %2332 = vmatprep.subr.mxu0 0.0
        %2333 = vmatpush1.msra.mxu0 0.0
        %2334 = vmatprep.subr.mxu0 0.0
        %2335 = vmatpush1.msra.mxu0 0.0
        %2336 = vmatprep.subr.mxu0 0.0
        %2337 = vmatpush1.msra.mxu0 0.0
        %2338 = vmatprep.subr.mxu0 0.0
        %2339 = vmatpush1.msra.mxu0 0.0
        %2340 = vmatprep.subr.mxu0 0.0
        %2341 = vmatpush1.msra.mxu0 0.0
        %2342 = vmatprep.subr.mxu0 0.0
        %2343 = vmatpush1.msra.mxu0 0.0
        %2344 = vmatprep.subr.mxu0 0.0
        %2345 = vmatpush1.msra.mxu0 0.0
        %2346 = vmatprep.subr.mxu0 0.0
        %2347 = vmatpush1.msra.mxu0 0.0
        %2348 = vmatprep.subr.mxu0 0.0
        %2349 = vmatpush1.msra.mxu0 0.0
        %2350 = vmatprep.subr.mxu0 0.0
        %2351 = vmatpush1.msra.mxu0 0.0
        %2352 = vmatprep.subr.mxu0 0.0
        %2353 = vmatpush1.msra.mxu0 0.0
        %2354 = vmatprep.subr.mxu0 0.0
        %2355 = vmatpush1.msra.mxu0 0.0
        %2356 = vmatprep.subr.mxu0 0.0
        %2357 = vmatpush1.msra.mxu0 0.0
        %2358 = vmatprep.subr.mxu0 0.0
        %2359 = vmatpush1.msra.mxu0 0.0
        %2360 = vmatprep.subr.mxu0 0.0
        %2361 = vmatpush1.msra.mxu0 %v1205
        %2362 = vmatprep.subr.mxu0 0.0
        %2363 = vmatpush2.msra.mxu0 0.0
        %2364 = vmatprep.subr.mxu0 0.0
        %2365 = vmatpush2.msra.mxu0 0.0
        %2366 = vmatprep.subr.mxu0 0.0
        %2367 = vmatpush2.msra.mxu0 0.0
        %2368 = vmatprep.subr.mxu0 0.0
        %2369 = vmatpush2.msra.mxu0 0.0
        %2370 = vmatprep.subr.mxu0 0.0
        %2371 = vmatpush2.msra.mxu0 0.0
        %2372 = vmatprep.subr.mxu0 0.0
        %2373 = vmatpush2.msra.mxu0 0.0
        %2374 = vmatprep.subr.mxu0 0.0
        %2375 = vmatpush2.msra.mxu0 0.0
        %2376 = vmatprep.subr.mxu0 0.0
        %2377 = vmatpush2.msra.mxu0 0.0
        %2378 = vmatprep.subr.mxu0 0.0
        %2379 = vmatpush2.msra.mxu0 0.0
        %2380 = vmatprep.subr.mxu0 0.0
        %2381 = vmatpush2.msra.mxu0 0.0
        %2382 = vmatprep.subr.mxu0 0.0
        %2383 = vmatpush2.msra.mxu0 0.0
        %2384 = vmatprep.subr.mxu0 0.0
        %2385 = vmatpush2.msra.mxu0 0.0
        %2386 = vmatprep.subr.mxu0 0.0
        %2387 = vmatpush2.msra.mxu0 0.0
        %2388 = vmatprep.subr.mxu0 0.0
        %2389 = vmatpush2.msra.mxu0 0.0
        %2390 = vmatprep.subr.mxu0 0.0
        %2391 = vmatpush2.msra.mxu0 0.0
        %2392 = vmatprep.subr.mxu0 0.0
        %2393 = vmatpush2.msra.mxu0 0.0
        %2394 = vmatprep.mubr.f32.mxu0 0.0
        %2395 = vmatmul.mubr.f32.gmra.mxu0 %v2328
        %v2396 = vpop.f32.mrf.mxu0
        %v2397 = vadd.f32 0.0, %v2396
        %v2398 = vpop.f32.mrf.mxu0
        %2399 = vdwg.mxu0
        %v2401 = vsel %vm1816, %v1864, 0
        %2403 = vmatprep.subr.mxu0 0.0
        %2404 = vmatpush1.msra.mxu0 0.0
        %2405 = vmatprep.subr.mxu0 0.0
        %2406 = vmatpush1.msra.mxu0 0.0
        %2407 = vmatprep.subr.mxu0 0.0
        %2408 = vmatpush1.msra.mxu0 0.0
        %2409 = vmatprep.subr.mxu0 0.0
        %2410 = vmatpush1.msra.mxu0 0.0
        %2411 = vmatprep.subr.mxu0 0.0
        %2412 = vmatpush1.msra.mxu0 0.0
        %2413 = vmatprep.subr.mxu0 0.0
        %2414 = vmatpush1.msra.mxu0 0.0
        %2415 = vmatprep.subr.mxu0 0.0
        %2416 = vmatpush1.msra.mxu0 0.0
        %2417 = vmatprep.subr.mxu0 0.0
        %2418 = vmatpush1.msra.mxu0 0.0
        %2419 = vmatprep.subr.mxu0 0.0
        %2420 = vmatpush1.msra.mxu0 0.0
        %2421 = vmatprep.subr.mxu0 0.0
        %2422 = vmatpush1.msra.mxu0 0.0
        %2423 = vmatprep.subr.mxu0 0.0
        %2424 = vmatpush1.msra.mxu0 0.0
        %2425 = vmatprep.subr.mxu0 0.0
        %2426 = vmatpush1.msra.mxu0 0.0
        %2427 = vmatprep.subr.mxu0 0.0
        %2428 = vmatpush1.msra.mxu0 0.0
        %2429 = vmatprep.subr.mxu0 0.0
        %2430 = vmatpush1.msra.mxu0 0.0
        %2431 = vmatprep.subr.mxu0 0.0
        %2432 = vmatpush1.msra.mxu0 0.0
        %2433 = vmatprep.subr.mxu0 0.0
        %2434 = vmatpush1.msra.mxu0 %v1206
        %2435 = vmatprep.subr.mxu0 0.0
        %2436 = vmatpush2.msra.mxu0 0.0
        %2437 = vmatprep.subr.mxu0 0.0
        %2438 = vmatpush2.msra.mxu0 0.0
        %2439 = vmatprep.subr.mxu0 0.0
        %2440 = vmatpush2.msra.mxu0 0.0
        %2441 = vmatprep.subr.mxu0 0.0
        %2442 = vmatpush2.msra.mxu0 0.0
        %2443 = vmatprep.subr.mxu0 0.0
        %2444 = vmatpush2.msra.mxu0 0.0
        %2445 = vmatprep.subr.mxu0 0.0
        %2446 = vmatpush2.msra.mxu0 0.0
        %2447 = vmatprep.subr.mxu0 0.0
        %2448 = vmatpush2.msra.mxu0 0.0
        %2449 = vmatprep.subr.mxu0 0.0
        %2450 = vmatpush2.msra.mxu0 0.0
        %2451 = vmatprep.subr.mxu0 0.0
        %2452 = vmatpush2.msra.mxu0 0.0
        %2453 = vmatprep.subr.mxu0 0.0
        %2454 = vmatpush2.msra.mxu0 0.0
        %2455 = vmatprep.subr.mxu0 0.0
        %2456 = vmatpush2.msra.mxu0 0.0
        %2457 = vmatprep.subr.mxu0 0.0
        %2458 = vmatpush2.msra.mxu0 0.0
        %2459 = vmatprep.subr.mxu0 0.0
        %2460 = vmatpush2.msra.mxu0 0.0
        %2461 = vmatprep.subr.mxu0 0.0
        %2462 = vmatpush2.msra.mxu0 0.0
        %2463 = vmatprep.subr.mxu0 0.0
        %2464 = vmatpush2.msra.mxu0 0.0
        %2465 = vmatprep.subr.mxu0 0.0
        %2466 = vmatpush2.msra.mxu0 0.0
        %2467 = vmatprep.mubr.f32.mxu0 0.0
        %2468 = vmatmul.mubr.f32.gmra.mxu0 %v2401
        %v2469 = vpop.f32.mrf.mxu0
        %v2470 = vadd.f32 0.0, %v2469
        %v2471 = vpop.f32.mrf.mxu0
        %2472 = vdwg.mxu0
        %v2473 = vrcp.pop %v1867
        %v2474 = vrcp.pop %v1870
        %v2475 = vrcp.pop %v1873
        %v2476 = vrcp.pop %v1876
        %v2477 = vrcp.pop %v1879
        %v2478 = vrcp.pop %v1882
        %v2479 = vrcp.pop %v1885
        %v2480 = vrcp.pop %v1888
        %v2481 = vmul.f32 %v1867, %v2473
        %v2482 = vmul.f32 %v1870, %v2474
        %v2483 = vmul.f32 %v1873, %v2475
        %v2484 = vmul.f32 %v1876, %v2476
        %v2485 = vmul.f32 %v1879, %v2477
        %v2486 = vmul.f32 %v1882, %v2478
        %v2487 = vmul.f32 %v1885, %v2479
        %v2488 = vmul.f32 %v1888, %v2480
        %v2489 = vsub.f32 2.0, %v2481
        %v2490 = vsub.f32 2.0, %v2482
        %v2491 = vsub.f32 2.0, %v2483
        %v2492 = vsub.f32 2.0, %v2484
        %v2493 = vsub.f32 2.0, %v2485
        %v2494 = vsub.f32 2.0, %v2486
        %v2495 = vsub.f32 2.0, %v2487
        %v2496 = vsub.f32 2.0, %v2488
        %v2497 = vmul.f32 %v2473, %v2489
        %v2498 = vmul.f32 %v2474, %v2490
        %v2499 = vmul.f32 %v2475, %v2491
        %v2500 = vmul.f32 %v2476, %v2492
        %v2501 = vmul.f32 %v2477, %v2493
        %v2502 = vmul.f32 %v2478, %v2494
        %v2503 = vmul.f32 %v2479, %v2495
        %v2504 = vmul.f32 %v2480, %v2496
        %v2505 = vmul.f32 %v1959, %v2497
        %v2506 = vmul.f32 %v2032, %v2498
        %v2507 = vmul.f32 %v2105, %v2499
        %v2508 = vmul.f32 %v2178, %v2500
        %v2509 = vmul.f32 %v2251, %v2501
        %v2510 = vmul.f32 %v2324, %v2502
        %v2511 = vmul.f32 %v2397, %v2503
        %v2512 = vmul.f32 %v2470, %v2504
        %v2513 = vcombine.low %v2505, %v2507
        %v2514 = vcombine.high %v2505, %v2507
        %v2516 = vunpack.c.l.s4 1983009808
        %v2517 = vunpack.c.0.s8 %v2516
        %v2518 = vlaneseq
        %v2519 = vshrl.u32 %v2518, 7
        %v2520 = vsub.s32 %v2517, %v2519
        %v2521 = vrot.slane %v2513, %v2520
        %v2523 = vunpack.c.l.s4 1983009808
        %v2524 = vunpack.c.0.s8 %v2523
        %v2525 = vlaneseq
        %v2526 = vshrl.u32 %v2525, 7
        %v2527 = vsub.s32 %v2524, %v2526
        %v2528 = vrot.slane %v2514, %v2527
        %v2529 = vcombine.low %v2506, %v2508
        %v2530 = vcombine.high %v2506, %v2508
        %v2532 = vunpack.c.l.s4 1983009808
        %v2533 = vunpack.c.0.s8 %v2532
        %v2534 = vlaneseq
        %v2535 = vshrl.u32 %v2534, 7
        %v2536 = vsub.s32 %v2533, %v2535
        %v2537 = vrot.slane %v2529, %v2536
        %v2539 = vunpack.c.l.s4 1983009808
        %v2540 = vunpack.c.0.s8 %v2539
        %v2541 = vlaneseq
        %v2542 = vshrl.u32 %v2541, 7
        %v2543 = vsub.s32 %v2540, %v2542
        %v2544 = vrot.slane %v2530, %v2543
        %v2545 = vcombine.low %v2509, %v2511
        %v2546 = vcombine.high %v2509, %v2511
        %v2548 = vunpack.c.l.s4 1983009808
        %v2549 = vunpack.c.0.s8 %v2548
        %v2550 = vlaneseq
        %v2551 = vshrl.u32 %v2550, 7
        %v2552 = vsub.s32 %v2549, %v2551
        %v2553 = vrot.slane %v2545, %v2552
        %v2555 = vunpack.c.l.s4 1983009808
        %v2556 = vunpack.c.0.s8 %v2555
        %v2557 = vlaneseq
        %v2558 = vshrl.u32 %v2557, 7
        %v2559 = vsub.s32 %v2556, %v2558
        %v2560 = vrot.slane %v2546, %v2559
        %v2561 = vcombine.low %v2510, %v2512
        %v2562 = vcombine.high %v2510, %v2512
        %v2564 = vunpack.c.l.s4 1983009808
        %v2565 = vunpack.c.0.s8 %v2564
        %v2566 = vlaneseq
        %v2567 = vshrl.u32 %v2566, 7
        %v2568 = vsub.s32 %v2565, %v2567
        %v2569 = vrot.slane %v2561, %v2568
        %v2571 = vunpack.c.l.s4 1983009808
        %v2572 = vunpack.c.0.s8 %v2571
        %v2573 = vlaneseq
        %v2574 = vshrl.u32 %v2573, 7
        %v2575 = vsub.s32 %v2572, %v2574
        %v2576 = vrot.slane %v2562, %v2575
        %v2577 = vcombine.low %v2521, %v2537
        %v2578 = vcombine.high %v2521, %v2537
        %v2580 = vunpack.c.l.s4 1934713408
        %v2581 = vunpack.c.0.s8 %v2580
        %v2582 = vlaneseq
        %v2583 = vshrl.u32 %v2582, 7
        %v2584 = vsub.s32 %v2581, %v2583
        %v2585 = vrot.slane %v2577, %v2584
        %v2587 = vunpack.c.l.s4 1934713408
        %v2588 = vunpack.c.0.s8 %v2587
        %v2589 = vlaneseq
        %v2590 = vshrl.u32 %v2589, 7
        %v2591 = vsub.s32 %v2588, %v2590
        %v2592 = vrot.slane %v2578, %v2591
        %v2593 = vcombine.low %v2528, %v2544
        %v2594 = vcombine.high %v2528, %v2544
        %v2596 = vunpack.c.l.s4 1934713408
        %v2597 = vunpack.c.0.s8 %v2596
        %v2598 = vlaneseq
        %v2599 = vshrl.u32 %v2598, 7
        %v2600 = vsub.s32 %v2597, %v2599
        %v2601 = vrot.slane %v2593, %v2600
        %v2603 = vunpack.c.l.s4 1934713408
        %v2604 = vunpack.c.0.s8 %v2603
        %v2605 = vlaneseq
        %v2606 = vshrl.u32 %v2605, 7
        %v2607 = vsub.s32 %v2604, %v2606
        %v2608 = vrot.slane %v2594, %v2607
        %v2609 = vcombine.low %v2553, %v2569
        %v2610 = vcombine.high %v2553, %v2569
        %v2612 = vunpack.c.l.s4 1934713408
        %v2613 = vunpack.c.0.s8 %v2612
        %v2614 = vlaneseq
        %v2615 = vshrl.u32 %v2614, 7
        %v2616 = vsub.s32 %v2613, %v2615
        %v2617 = vrot.slane %v2609, %v2616
        %v2619 = vunpack.c.l.s4 1934713408
        %v2620 = vunpack.c.0.s8 %v2619
        %v2621 = vlaneseq
        %v2622 = vshrl.u32 %v2621, 7
        %v2623 = vsub.s32 %v2620, %v2622
        %v2624 = vrot.slane %v2610, %v2623
        %v2625 = vcombine.low %v2560, %v2576
        %v2626 = vcombine.high %v2560, %v2576
        %v2628 = vunpack.c.l.s4 1934713408
        %v2629 = vunpack.c.0.s8 %v2628
        %v2630 = vlaneseq
        %v2631 = vshrl.u32 %v2630, 7
        %v2632 = vsub.s32 %v2629, %v2631
        %v2633 = vrot.slane %v2625, %v2632
        %v2635 = vunpack.c.l.s4 1934713408
        %v2636 = vunpack.c.0.s8 %v2635
        %v2637 = vlaneseq
        %v2638 = vshrl.u32 %v2637, 7
        %v2639 = vsub.s32 %v2636, %v2638
        %v2640 = vrot.slane %v2626, %v2639
        %v2641 = vcombine.low %v2585, %v2617
        %v2642 = vcombine.high %v2585, %v2617
        %v2643 = vcombine.low %v2592, %v2624
        %v2644 = vcombine.high %v2592, %v2624
        %v2645 = vcombine.low %v2601, %v2633
        %v2646 = vcombine.high %v2601, %v2633
        %v2647 = vcombine.low %v2608, %v2640
        %v2648 = vcombine.high %v2608, %v2640
        %v2649 = vcombine.low %v2641, %v2643
        %v2650 = vcombine.high %v2641, %v2643
        %v2652 = vunpack.c.l.s4 1983009808
        %v2653 = vunpack.c.0.s8 %v2652
        %v2654 = vlaneseq
        %v2655 = vshrl.u32 %v2654, 7
        %v2656 = vsub.s32 %v2653, %v2655
        %v2657 = vrot.slane %v2649, %v2656
        %v2659 = vunpack.c.l.s4 1983009808
        %v2660 = vunpack.c.0.s8 %v2659
        %v2661 = vlaneseq
        %v2662 = vshrl.u32 %v2661, 7
        %v2663 = vsub.s32 %v2660, %v2662
        %v2664 = vrot.slane %v2650, %v2663
        %v2665 = vcombine.low %v2642, %v2644
        %v2666 = vcombine.high %v2642, %v2644
        %v2668 = vunpack.c.l.s4 1983009808
        %v2669 = vunpack.c.0.s8 %v2668
        %v2670 = vlaneseq
        %v2671 = vshrl.u32 %v2670, 7
        %v2672 = vsub.s32 %v2669, %v2671
        %v2673 = vrot.slane %v2665, %v2672
        %v2675 = vunpack.c.l.s4 1983009808
        %v2676 = vunpack.c.0.s8 %v2675
        %v2677 = vlaneseq
        %v2678 = vshrl.u32 %v2677, 7
        %v2679 = vsub.s32 %v2676, %v2678
        %v2680 = vrot.slane %v2666, %v2679
        %v2681 = vcombine.low %v2645, %v2647
        %v2682 = vcombine.high %v2645, %v2647
        %v2684 = vunpack.c.l.s4 1983009808
        %v2685 = vunpack.c.0.s8 %v2684
        %v2686 = vlaneseq
        %v2687 = vshrl.u32 %v2686, 7
        %v2688 = vsub.s32 %v2685, %v2687
        %v2689 = vrot.slane %v2681, %v2688
        %v2691 = vunpack.c.l.s4 1983009808
        %v2692 = vunpack.c.0.s8 %v2691
        %v2693 = vlaneseq
        %v2694 = vshrl.u32 %v2693, 7
        %v2695 = vsub.s32 %v2692, %v2694
        %v2696 = vrot.slane %v2682, %v2695
        %v2697 = vcombine.low %v2646, %v2648
        %v2698 = vcombine.high %v2646, %v2648
        %v2700 = vunpack.c.l.s4 1983009808
        %v2701 = vunpack.c.0.s8 %v2700
        %v2702 = vlaneseq
        %v2703 = vshrl.u32 %v2702, 7
        %v2704 = vsub.s32 %v2701, %v2703
        %v2705 = vrot.slane %v2697, %v2704
        %v2707 = vunpack.c.l.s4 1983009808
        %v2708 = vunpack.c.0.s8 %v2707
        %v2709 = vlaneseq
        %v2710 = vshrl.u32 %v2709, 7
        %v2711 = vsub.s32 %v2708, %v2710
        %v2712 = vrot.slane %v2698, %v2711
        %v2713 = vcombine.low %v2657, %v2673
        %v2714 = vcombine.high %v2657, %v2673
        %v2716 = vunpack.c.l.s4 1934713408
        %v2717 = vunpack.c.0.s8 %v2716
        %v2718 = vlaneseq
        %v2719 = vshrl.u32 %v2718, 7
        %v2720 = vsub.s32 %v2717, %v2719
        %v2721 = vrot.slane %v2713, %v2720
        %v2723 = vunpack.c.l.s4 1934713408
        %v2724 = vunpack.c.0.s8 %v2723
        %v2725 = vlaneseq
        %v2726 = vshrl.u32 %v2725, 7
        %v2727 = vsub.s32 %v2724, %v2726
        %v2728 = vrot.slane %v2714, %v2727
        %v2729 = vcombine.low %v2664, %v2680
        %v2730 = vcombine.high %v2664, %v2680
        %v2732 = vunpack.c.l.s4 1934713408
        %v2733 = vunpack.c.0.s8 %v2732
        %v2734 = vlaneseq
        %v2735 = vshrl.u32 %v2734, 7
        %v2736 = vsub.s32 %v2733, %v2735
        %v2737 = vrot.slane %v2729, %v2736
        %v2739 = vunpack.c.l.s4 1934713408
        %v2740 = vunpack.c.0.s8 %v2739
        %v2741 = vlaneseq
        %v2742 = vshrl.u32 %v2741, 7
        %v2743 = vsub.s32 %v2740, %v2742
        %v2744 = vrot.slane %v2730, %v2743
        %v2745 = vcombine.low %v2689, %v2705
        %v2746 = vcombine.high %v2689, %v2705
        %v2748 = vunpack.c.l.s4 1934713408
        %v2749 = vunpack.c.0.s8 %v2748
        %v2750 = vlaneseq
        %v2751 = vshrl.u32 %v2750, 7
        %v2752 = vsub.s32 %v2749, %v2751
        %v2753 = vrot.slane %v2745, %v2752
        %v2755 = vunpack.c.l.s4 1934713408
        %v2756 = vunpack.c.0.s8 %v2755
        %v2757 = vlaneseq
        %v2758 = vshrl.u32 %v2757, 7
        %v2759 = vsub.s32 %v2756, %v2758
        %v2760 = vrot.slane %v2746, %v2759
        %v2761 = vcombine.low %v2696, %v2712
        %v2762 = vcombine.high %v2696, %v2712
        %v2764 = vunpack.c.l.s4 1934713408
        %v2765 = vunpack.c.0.s8 %v2764
        %v2766 = vlaneseq
        %v2767 = vshrl.u32 %v2766, 7
        %v2768 = vsub.s32 %v2765, %v2767
        %v2769 = vrot.slane %v2761, %v2768
        %v2771 = vunpack.c.l.s4 1934713408
        %v2772 = vunpack.c.0.s8 %v2771
        %v2773 = vlaneseq
        %v2774 = vshrl.u32 %v2773, 7
        %v2775 = vsub.s32 %v2772, %v2774
        %v2776 = vrot.slane %v2762, %v2775
        %v2777 = vcombine.low %v2721, %v2753
        %v2778 = vcombine.high %v2721, %v2753
        %v2779 = vcombine.low %v2728, %v2760
        %v2780 = vcombine.high %v2728, %v2760
        %v2781 = vcombine.low %v2737, %v2769
        %v2782 = vcombine.high %v2737, %v2769
        %v2783 = vcombine.low %v2744, %v2776
        %v2784 = vcombine.high %v2744, %v2776
        %2786 = vrot.lane.b32.xlu0 %v2778, 4
        %v2787 = vpop.permute.xlu0 %2786
        %2790 = vrot.lane.b32.xlu0 %v2779, 8
        %v2791 = vpop.permute.xlu0 %2790
        %2794 = vrot.lane.b32.xlu0 %v2780, 12
        %v2795 = vpop.permute.xlu0 %2794
        %2798 = vrot.lane.b32.xlu0 %v2781, 16
        %v2799 = vpop.permute.xlu0 %2798
        %2802 = vrot.lane.b32.xlu0 %v2782, 20
        %v2803 = vpop.permute.xlu0 %2802
        %2806 = vrot.lane.b32.xlu0 %v2783, 24
        %v2807 = vpop.permute.xlu0 %2806
        %2810 = vrot.lane.b32.xlu0 %v2784, 28
        %v2811 = vpop.permute.xlu0 %2810
        %v2813 = vsel %vm1207, %v2777, %v2787
        %v2814 = vsel %vm1816, %v2813, %v2791
        %vm2815 = vcmask 97280
        %v2816 = vsel %vm2815, %v2814, %v2795
        %vm2817 = vcmask 130048
        %v2818 = vsel %vm2817, %v2816, %v2799
        %vm2819 = vcmask 162816
        %v2820 = vsel %vm2819, %v2818, %v2803
        %vm2821 = vcmask 195584
        %v2822 = vsel %vm2821, %v2820, %v2807
        %vm2823 = vcmask 228352
        %v2824 = vsel %vm2823, %v2822, %v2811
        %v2825 = vld [vmem:[#allocation7] sm:$0xff]
        %v2826 = vld [vmem:[#allocation7 + $0x8] sm:$0xff]
        %v2827 = vld [vmem:[#allocation7 + $0x10] sm:$0xff]
        %v2828 = vld [vmem:[#allocation7 + $0x18] sm:$0xff]
        %v2829 = vld [vmem:[%s3] sm:$0x1]
        %v2831 = vlaneseq
        %v2832 = vshrl.u32 %v2831, 7
        %v2833 = vsub.s32 0, %v2832
        %v2834 = vrot.slane %v2829, %v2833
        %v2837 = vsel %vm247, %v2824, 0
        %2839 = vmatprep.subr.mxu0 0.0
        %2840 = vmatpush1.msra.mxu0 0.0
        %2841 = vmatprep.subr.mxu0 0.0
        %2842 = vmatpush1.msra.mxu0 0.0
        %2843 = vmatprep.subr.mxu0 0.0
        %2844 = vmatpush1.msra.mxu0 0.0
        %2845 = vmatprep.subr.mxu0 0.0
        %2846 = vmatpush1.msra.mxu0 0.0
        %2847 = vmatprep.subr.mxu0 0.0
        %2848 = vmatpush1.msra.mxu0 0.0
        %2849 = vmatprep.subr.mxu0 0.0
        %2850 = vmatpush1.msra.mxu0 0.0
        %2851 = vmatprep.subr.mxu0 0.0
        %2852 = vmatpush1.msra.mxu0 0.0
        %2853 = vmatprep.subr.mxu0 0.0
        %2854 = vmatpush1.msra.mxu0 0.0
        %2855 = vmatprep.subr.mxu0 0.0
        %2856 = vmatpush1.msra.mxu0 0.0
        %2857 = vmatprep.subr.mxu0 0.0
        %2858 = vmatpush1.msra.mxu0 0.0
        %2859 = vmatprep.subr.mxu0 0.0
        %2860 = vmatpush1.msra.mxu0 0.0
        %2861 = vmatprep.subr.mxu0 0.0
        %2862 = vmatpush1.msra.mxu0 0.0
        %2863 = vmatprep.subr.mxu0 0.0
        %2864 = vmatpush1.msra.mxu0 %v2828
        %2865 = vmatprep.subr.mxu0 0.0
        %2866 = vmatpush1.msra.mxu0 %v2827
        %2867 = vmatprep.subr.mxu0 0.0
        %2868 = vmatpush1.msra.mxu0 %v2826
        %2869 = vmatprep.subr.mxu0 0.0
        %2870 = vmatpush1.msra.mxu0 %v2825
        %2871 = vmatprep.subr.mxu0 0.0
        %2872 = vmatpush2.msra.mxu0 0.0
        %2873 = vmatprep.subr.mxu0 0.0
        %2874 = vmatpush2.msra.mxu0 0.0
        %2875 = vmatprep.subr.mxu0 0.0
        %2876 = vmatpush2.msra.mxu0 0.0
        %2877 = vmatprep.subr.mxu0 0.0
        %2878 = vmatpush2.msra.mxu0 0.0
        %2879 = vmatprep.subr.mxu0 0.0
        %2880 = vmatpush2.msra.mxu0 0.0
        %2881 = vmatprep.subr.mxu0 0.0
        %2882 = vmatpush2.msra.mxu0 0.0
        %2883 = vmatprep.subr.mxu0 0.0
        %2884 = vmatpush2.msra.mxu0 0.0
        %2885 = vmatprep.subr.mxu0 0.0
        %2886 = vmatpush2.msra.mxu0 0.0
        %2887 = vmatprep.subr.mxu0 0.0
        %2888 = vmatpush2.msra.mxu0 0.0
        %2889 = vmatprep.subr.mxu0 0.0
        %2890 = vmatpush2.msra.mxu0 0.0
        %2891 = vmatprep.subr.mxu0 0.0
        %2892 = vmatpush2.msra.mxu0 0.0
        %2893 = vmatprep.subr.mxu0 0.0
        %2894 = vmatpush2.msra.mxu0 0.0
        %2895 = vmatprep.subr.mxu0 0.0
        %2896 = vmatpush2.msra.mxu0 0.0
        %2897 = vmatprep.subr.mxu0 0.0
        %2898 = vmatpush2.msra.mxu0 0.0
        %2899 = vmatprep.subr.mxu0 0.0
        %2900 = vmatpush2.msra.mxu0 0.0
        %2901 = vmatprep.subr.mxu0 0.0
        %2902 = vmatpush2.msra.mxu0 0.0
        %2903 = vmatprep.mubr.f32.mxu0 0.0
        %2904 = vmatmul.mubr.f32.gmra.mxu0 %v2837
        %v2905 = vpop.f32.mrf.mxu0
        %v2906 = vadd.f32 %v2834, %v2905
        %v2907 = vpop.f32.mrf.mxu0
        %2908 = vdwg.mxu0
        %2909 = vst.msk [vmem:[%s241] sm:$0xff] %vm247, %v2906
        %s2910 = sand.u32 %s119, 1
        %s2911 = scalar_lea.sflag [#allocation4], %s2910
        %s2912 = sand.u32 %s119, 1
        %s2913 = smul.addr %s2912, 8
        %s2914 = scalar_lea.vmem [#allocation8], %s2913
        // Predicated region
        $region49: #{tpu_custom_call.1} parent=35 // pred_check
          %p2915 = pneg %p129
        $region50: #{tpu_custom_call.1} parent=35 // pred_check_branch
          %2917 = sbr.rel (%p2915) target = $region52
        $region51: #{tpu_custom_call.1} parent=35 // pred_region
          %s2919 = ssub.s32 128, 128
          %2920 = vsyncadd %s2911, %s2919
          %s2921 = smul.addr %s22, 128
          %s2922 = scalar_lea.hbm %s4, %s2921
          %s2924 = sshll.u32 %s2914, 4
          %s2925 = int_to_ptr.vmem [resolvable:$true] %s2924
          %2927 = dma.vmem_to_hbm [thread:$0]  %s2925, 128, %s2922, %s2911
        $region52: #{tpu_custom_call.1} parent=35 // pred_fallthru
          _
      $region36: #{tpu_custom_call.1} parent=5 // pred_fallthru
        _
      %p2928 = scmp.le.s32.totalorder 2, %s17
      // Predicated region
      $region53: #{tpu_custom_call.1} parent=5 // pred_check
        %p2929 = pneg %p2928
      $region54: #{tpu_custom_call.1} parent=5 // pred_check_branch
        %2931 = sbr.rel (%p2929) target = $region56
      $region55: #{tpu_custom_call.1} parent=5 // pred_region
        %s2932 = ssub.s32 %s17, 2
        // Predicated region
        $region57: #{tpu_custom_call.1} parent=55 // pred_check
          %p2933 = pneg %p135
        $region58: #{tpu_custom_call.1} parent=55 // pred_check_branch
          %2935 = sbr.rel (%p2933) target = $region60
        $region59: #{tpu_custom_call.1} parent=55 // pred_region
          %s2936 = sand.u32 %s120, 1
          %s2937 = scalar_lea.sflag [#allocation4], %s2936
          %s2938 = sand.u32 %s120, 1
          %s2939 = smul.addr %s2938, 8
          %s2940 = scalar_lea.vmem [#allocation8], %s2939
          %2941 = dma.done %s2937, 128
        $region60: #{tpu_custom_call.1} parent=55 // pred_fallthru
          _
      $region56: #{tpu_custom_call.1} parent=5 // pred_fallthru
        _
    $region6: #{tpu_custom_call.1} parent=1 // loop_footer
      %s21 = sadd.s32 1, %s17
    $region7: #{tpu_custom_call.1} parent=1 // loop_footer_branch
      %16 = sbr.rel target = $region3
    $region8: #{tpu_custom_call.1} parent=1 // loop_exit
      _
    %2942 = vsyncpa [#allocation3], 1
    %s2943 = scalar_lea.sflag [#allocation3], 1
    %2944 = vsyncpa %s2943, 1
    %2945 = vsyncpa [#allocation6], 1
    %2946 = vsyncpa [#allocation4], 1
    %s2947 = scalar_lea.sflag [#allocation4], 1
    %2948 = vsyncpa %s2947, 1

</llo_original>
